<compile_context>
chip_gen: v5e
topology: v5e:2x2
jax: 0.10.0
libtpu: 0.0.40
codegen_flags: <defaults>
</compile_context>

<pallas_src>
import jax
import jax.numpy as jnp
from jax.experimental import pallas as pl
from jax.experimental.pallas import tpu as pltpu


def _make_kernel(D, H, W, k_tile):
    HW = H * W

    def kernel(lo_ref, hi_ref, x_ref, grid_ref, flow_ref, o_ref,
               acc_ref, idx_ref, w_ref):
        # lo_ref/hi_ref: (N, num_T) int32 SMEM (scalar prefetch): per output
        #                tile, first/last S_in block that can hold its corners.
        # x_ref:    (1, C, K_TILE)   lane-dense input block
        # grid_ref: (1, 3, T_TILE)   normalized sampling grid (x, y, z rows)
        # flow_ref: (1, 3, T_TILE)
        # o_ref:    (1, C, T_TILE)
        # acc_ref:  (C, T_TILE) f32  accumulator (resident across K)
        # idx_ref:  (8, T_TILE) i32  flat corner indices (hoisted, per tile)
        # w_ref:    (8, T_TILE) f32  trilinear corner weights (hoisted)
        n = pl.program_id(0)
        t = pl.program_id(1)
        k = pl.program_id(2)

        @pl.when(k == 0)
        def _init():
            acc_ref[...] = jnp.zeros_like(acc_ref)

            # Per-output-tile sampling geometry is K-invariant: compute once.
            g = grid_ref[0] + flow_ref[0]                     # (3, T)
            gx = g[0:1, :]
            gy = g[1:2, :]
            gz = g[2:3, :]

            # align_corners=True un-normalization + border clamp.
            ix = jnp.clip((gx + 1.0) * (0.5 * (W - 1)), 0.0, float(W - 1))
            iy = jnp.clip((gy + 1.0) * (0.5 * (H - 1)), 0.0, float(H - 1))
            iz = jnp.clip((gz + 1.0) * (0.5 * (D - 1)), 0.0, float(D - 1))

            ix0f = jnp.floor(ix)
            iy0f = jnp.floor(iy)
            iz0f = jnp.floor(iz)
            fx = ix - ix0f
            fy = iy - iy0f
            fz = iz - iz0f

            ix0 = ix0f.astype(jnp.int32)
            iy0 = iy0f.astype(jnp.int32)
            iz0 = iz0f.astype(jnp.int32)
            ix1 = jnp.minimum(ix0 + 1, W - 1)
            iy1 = jnp.minimum(iy0 + 1, H - 1)
            iz1 = jnp.minimum(iz0 + 1, D - 1)

            xs = (ix0, ix1)
            ys = (iy0, iy1)
            zs = (iz0, iz1)
            wx = (1.0 - fx, fx)
            wy = (1.0 - fy, fy)
            wz = (1.0 - fz, fz)

            idx_rows = []
            w_rows = []
            for a in range(2):
                for b in range(2):
                    for c in range(2):
                        idx_rows.append(zs[a] * HW + ys[b] * W + xs[c])
                        w_rows.append(wz[a] * wy[b] * wx[c])
            idx_ref[...] = jnp.concatenate(idx_rows, axis=0)   # (8, T)
            w_ref[...] = jnp.concatenate(w_rows, axis=0)       # (8, T)

        kb = lo_ref[n, t] + k                  # absolute S_in block index
        in_band = kb <= hi_ref[n, t]

        @pl.when(in_band)
        def _compute():
            t_tile = w_ref.shape[1]
            base = kb * k_tile
            rows = jax.lax.broadcasted_iota(jnp.int32, (k_tile, t_tile), 0)

            # (K_TILE, T_TILE) slice of the trilinear one-hot matrix.
            m = jnp.where(rows == (idx_ref[0:1, :] - base), w_ref[0:1, :], 0.0)
            for c in range(1, 8):
                m = m + jnp.where(rows == (idx_ref[c:c + 1, :] - base),
                                  w_ref[c:c + 1, :], 0.0)

            x_blk = x_ref[0]                                  # (C, K_TILE)
            if x_blk.dtype == jnp.bfloat16:
                m = m.astype(jnp.bfloat16)      # bf16 MXU path (v6e/v7x)
            else:
                x_blk = x_blk.astype(jnp.float32)
            acc_ref[...] += jnp.dot(x_blk, m,
                                    preferred_element_type=jnp.float32)

        @pl.when(k == pl.num_programs(2) - 1)
        def _finalize():
            o_ref[0] = acc_ref[...].astype(o_ref.dtype)

    return kernel


def _compute_bands(sample_grid, flow, D, H, W, num_t, t_tile, k_tile):
    """Per output tile: [min, max] S_in block index that can contain corners."""
    N = sample_grid.shape[0]
    S = D * H * W
    g = (sample_grid + flow).reshape(N, S, 3)
    gx, gy, gz = g[..., 0], g[..., 1], g[..., 2]
    ix0 = jnp.floor(jnp.clip((gx + 1.0) * 0.5 * (W - 1), 0.0, W - 1.0)).astype(jnp.int32)
    iy0 = jnp.floor(jnp.clip((gy + 1.0) * 0.5 * (H - 1), 0.0, H - 1.0)).astype(jnp.int32)
    iz0 = jnp.floor(jnp.clip((gz + 1.0) * 0.5 * (D - 1), 0.0, D - 1.0)).astype(jnp.int32)
    ix1 = jnp.minimum(ix0 + 1, W - 1)
    iy1 = jnp.minimum(iy0 + 1, H - 1)
    iz1 = jnp.minimum(iz0 + 1, D - 1)
    idx_min = iz0 * (H * W) + iy0 * W + ix0
    idx_max = iz1 * (H * W) + iy1 * W + ix1
    pad = num_t * t_tile - S
    if pad:
        # Padded output voxels are discarded; keep the band tight for valid ones.
        idx_min = jnp.pad(idx_min, ((0, 0), (0, pad)), constant_values=S - 1)
        idx_max = jnp.pad(idx_max, ((0, 0), (0, pad)), constant_values=0)
    band_lo = idx_min.reshape(N, num_t, t_tile).min(axis=-1) // k_tile
    band_hi = idx_max.reshape(N, num_t, t_tile).max(axis=-1) // k_tile
    return band_lo.astype(jnp.int32), band_hi.astype(jnp.int32)


def spatial_transform_unit(x, flow, sample_grid, *, t_tile=256, k_tile=256,
                           vmem_limit_bytes=32 * 1024 * 1024):
    """Pallas implementation of SpatialTransform_unit.forward."""
    N, C, D, H, W = x.shape
    S = D * H * W
    assert flow.shape == (N, D, H, W, 3)
    assert sample_grid.shape == (N, D, H, W, 3)
    assert t_tile % 128 == 0 and k_tile % 128 == 0

    num_t = pl.cdiv(S, t_tile)
    num_k = pl.cdiv(S, k_tile)
    s_out_pad = num_t * t_tile
    s_in_pad = num_k * k_tile

    # x: NCDHW flattened over the spatial axes is already lane-dense (N, C, S).
    x_flat = x.reshape(N, C, S)
    if s_in_pad != S:
        x_flat = jnp.pad(x_flat, ((0, 0), (0, 0), (0, s_in_pad - S)))

    # grid/flow -> (N, 3, S) lane-dense (only the small 3-component tensors are
    # transposed; the C*S volume is never transposed).
    def to_3s(a):
        a = jnp.transpose(a.reshape(N, S, 3), (0, 2, 1))
        if s_out_pad != S:
            a = jnp.pad(a, ((0, 0), (0, 0), (0, s_out_pad - S)))
        return a

    grid_flat = to_3s(sample_grid)
    flow_flat = to_3s(flow)

    band_lo, band_hi = _compute_bands(sample_grid, flow, D, H, W,
                                      num_t, t_tile, k_tile)

    # When called eagerly (concrete band arrays), shrink the K grid extent to
    # the widest band actually needed: removes per-step skip overhead entirely.
    # Under jit the values are tracers; fall back to the full (correct) extent.
    k_span = num_k
    try:
        k_span = min(int(jnp.max(band_hi - band_lo)) + 1, num_k)
        k_span = max(k_span, 1)
    except Exception:
        pass

    kernel = _make_kernel(D, H, W, k_tile)

    out_flat = pl.pallas_call(
        kernel,
        out_shape=jax.ShapeDtypeStruct((N, C, s_out_pad), x.dtype),
        grid_spec=pltpu.PrefetchScalarGridSpec(
            num_scalar_prefetch=2,
            grid=(N, num_t, k_span),
            in_specs=[
                # x block: walk only the banded K range; out-of-band steps clamp
                # to the last band block so no new DMA is issued.
                pl.BlockSpec(
                    (1, C, k_tile),
                    lambda n, t, k, lo, hi: (n, 0,
                                             jnp.minimum(lo[n, t] + k, hi[n, t]))),
                pl.BlockSpec((1, 3, t_tile), lambda n, t, k, lo, hi: (n, 0, t)),
                pl.BlockSpec((1, 3, t_tile), lambda n, t, k, lo, hi: (n, 0, t)),
            ],
            out_specs=pl.BlockSpec((1, C, t_tile),
                                   lambda n, t, k, lo, hi: (n, 0, t)),
            scratch_shapes=[pltpu.VMEM((C, t_tile), jnp.float32),
                            pltpu.VMEM((8, t_tile), jnp.int32),
                            pltpu.VMEM((8, t_tile), jnp.float32)],
        ),
        compiler_params=pltpu.CompilerParams(
            dimension_semantics=("parallel", "parallel", "arbitrary"),
            vmem_limit_bytes=vmem_limit_bytes),
    )(band_lo, band_hi, x_flat, grid_flat, flow_flat)

    return out_flat[:, :, :S].reshape(N, C, D, H, W)


def _grid_sample_ref(x, grid):
    """Pure-JAX reference: trilinear, border padding, align_corners=True."""
    N, C, D, H, W = x.shape
    gx, gy, gz = grid[..., 0], grid[..., 1], grid[..., 2]
    ix = jnp.clip((gx + 1.0) * 0.5 * (W - 1), 0.0, W - 1.0)
    iy = jnp.clip((gy + 1.0) * 0.5 * (H - 1), 0.0, H - 1.0)
    iz = jnp.clip((gz + 1.0) * 0.5 * (D - 1), 0.0, D - 1.0)
    ix0 = jnp.floor(ix).astype(jnp.int32)
    iy0 = jnp.floor(iy).astype(jnp.int32)
    iz0 = jnp.floor(iz).astype(jnp.int32)
    ix1 = jnp.minimum(ix0 + 1, W - 1)
    iy1 = jnp.minimum(iy0 + 1, H - 1)
    iz1 = jnp.minimum(iz0 + 1, D - 1)
    fx = ix - ix0
    fy = iy - iy0
    fz = iz - iz0

    def corner(izc, iyc, ixc):
        return jax.vmap(lambda xn, a, b, c: xn[:, a, b, c])(x, izc, iyc, ixc)

    out = jnp.zeros_like(x)
    for izc, wz in ((iz0, 1.0 - fz), (iz1, fz)):
        for iyc, wy in ((iy0, 1.0 - fy), (iy1, fy)):
            for ixc, wx in ((ix0, 1.0 - fx), (ix1, fx)):
                w = (wz * wy * wx)[:, None]                  # (N,1,D,H,W)
                out = out + w * corner(izc, iyc, ixc)
    return out


if __name__ == "__main__":
    key = jax.random.PRNGKey(0)
    k1, k2 = jax.random.split(key)

    N, C, D, H, W = 2, 4, 6, 10, 14   # S = 840: exercises tiling + padding

    x = jax.random.normal(k1, (N, C, D, H, W), dtype=jnp.float32)

    # Identity sampling grid in [-1, 1] with (x, y, z) ordering on the last dim.
    zs_ = jnp.linspace(-1.0, 1.0, D)
    ys_ = jnp.linspace(-1.0, 1.0, H)
    xs_ = jnp.linspace(-1.0, 1.0, W)
    gz, gy, gx = jnp.meshgrid(zs_, ys_, xs_, indexing="ij")
    sample_grid = jnp.broadcast_to(
        jnp.stack([gx, gy, gz], axis=-1), (N, D, H, W, 3)
    ).astype(jnp.float32)

    flow = 0.2 * jax.random.normal(k2, (N, D, H, W, 3), dtype=jnp.float32)

    out = spatial_transform_unit(x, flow, sample_grid, t_tile=256, k_tile=128)
    out = jax.block_until_ready(out)

    ref = _grid_sample_ref(x, sample_grid + flow)
    assert out.shape == (N, C, D, H, W)
    max_err = float(jnp.max(jnp.abs(out - ref)))
    assert jnp.allclose(out, ref, atol=2e-4, rtol=2e-4), max_err

    print("KERNEL_OK")
</pallas_src>

<mosaic_0001>
module attributes {stable_mosaic.version = 11 : i64} {
  func.func @kernel(%arg0: i32, %arg1: i32, %arg2: i32, %arg3: memref<2x4xi32, #tpu.memory_space<smem>>, %arg4: memref<2x4xi32, #tpu.memory_space<smem>>, %arg5: memref<1x4x128xf32, #tpu.memory_space<vmem>>, %arg6: memref<1x3x256xf32, #tpu.memory_space<vmem>>, %arg7: memref<1x3x256xf32, #tpu.memory_space<vmem>>, %arg8: memref<1x4x256xf32, #tpu.memory_space<vmem>>, %arg9: memref<4x256xf32, #tpu.memory_space<vmem>>, %arg10: memref<8x256xi32, #tpu.memory_space<vmem>>, %arg11: memref<8x256xf32, #tpu.memory_space<vmem>>) attributes {dimension_semantics = [#tpu.dimension_semantics<parallel>, #tpu.dimension_semantics<parallel>, #tpu.dimension_semantics<arbitrary>], iteration_bounds = array<i64: 2, 4, 7>, scalar_prefetch = 2 : i64, scratch_operands = 3 : i64, tpu.core_type = #tpu.core_type<tc>, window_params = [{transform_indices = @transform_0, window_bounds = array<i64: 1, 4, 128>}, {transform_indices = @transform_1, window_bounds = array<i64: 1, 3, 256>}, {transform_indices = @transform_2, window_bounds = array<i64: 1, 3, 256>}, {transform_indices = @transform_3, window_bounds = array<i64: 1, 4, 256>}]} {
    %c0_i32 = arith.constant 0 : i32
    %0 = arith.cmpi eq, %arg2, %c0_i32 : i32
    %1 = arith.extui %0 : i1 to i32
    %c0_i32_0 = arith.constant 0 : i32
    %2 = arith.cmpi ne, %1, %c0_i32_0 : i32
    scf.if %2 {
      %cst = arith.constant 0.000000e+00 : f32
      %16 = vector.broadcast %cst : f32 to vector<4x256xf32>
      %c0 = arith.constant 0 : index
      %c0_3 = arith.constant 0 : index
      %17 = vector.load %arg9[%c0, %c0_3] : memref<4x256xf32, #tpu.memory_space<vmem>>, vector<4x256xf32>
      tpu.vector_store %arg9[%c0, %c0_3], %16 {strides = array<i32>} : memref<4x256xf32, #tpu.memory_space<vmem>>, vector<4x256xf32>,
      %c0_4 = arith.constant 0 : index
      %c0_5 = arith.constant 0 : index
      %c0_6 = arith.constant 0 : index
      %18 = vector.load %arg6[%c0_4, %c0_5, %c0_6] : memref<1x3x256xf32, #tpu.memory_space<vmem>>, vector<1x3x256xf32>
      %19 = vector.shape_cast %18 : vector<1x3x256xf32> to vector<3x256xf32>
      %c0_7 = arith.constant 0 : index
      %c0_8 = arith.constant 0 : index
      %c0_9 = arith.constant 0 : index
      %20 = vector.load %arg7[%c0_7, %c0_8, %c0_9] : memref<1x3x256xf32, #tpu.memory_space<vmem>>, vector<1x3x256xf32>
      %21 = vector.shape_cast %20 : vector<1x3x256xf32> to vector<3x256xf32>
      %22 = arith.addf %19, %21 : vector<3x256xf32>
      %23 = vector.extract_strided_slice %22 {offsets = [0, 0], sizes = [1, 256], strides = [1, 1]} : vector<3x256xf32> to vector<1x256xf32>
      %24 = vector.extract_strided_slice %22 {offsets = [1, 0], sizes = [1, 256], strides = [1, 1]} : vector<3x256xf32> to vector<1x256xf32>
      %25 = vector.extract_strided_slice %22 {offsets = [2, 0], sizes = [1, 256], strides = [1, 1]} : vector<3x256xf32> to vector<1x256xf32>
      %cst_10 = arith.constant 1.000000e+00 : f32
      %26 = vector.broadcast %cst_10 : f32 to vector<1x256xf32>
      %27 = arith.addf %23, %26 : vector<1x256xf32>
      %cst_11 = arith.constant 6.500000e+00 : f32
      %28 = vector.broadcast %cst_11 : f32 to vector<1x256xf32>
      %29 = arith.mulf %27, %28 : vector<1x256xf32>
      %cst_12 = arith.constant 0.000000e+00 : f32
      %cst_13 = arith.constant 1.300000e+01 : f32
      %30 = vector.broadcast %cst_12 : f32 to vector<1x256xf32>
      %31 = arith.maximumf %30, %29 : vector<1x256xf32>
      %32 = vector.broadcast %cst_13 : f32 to vector<1x256xf32>
      %33 = arith.minimumf %32, %31 : vector<1x256xf32>
      %cst_14 = arith.constant 1.000000e+00 : f32
      %34 = vector.broadcast %cst_14 : f32 to vector<1x256xf32>
      %35 = arith.addf %24, %34 : vector<1x256xf32>
      %cst_15 = arith.constant 4.500000e+00 : f32
      %36 = vector.broadcast %cst_15 : f32 to vector<1x256xf32>
      %37 = arith.mulf %35, %36 : vector<1x256xf32>
      %cst_16 = arith.constant 0.000000e+00 : f32
      %cst_17 = arith.constant 9.000000e+00 : f32
      %38 = vector.broadcast %cst_16 : f32 to vector<1x256xf32>
      %39 = arith.maximumf %38, %37 : vector<1x256xf32>
      %40 = vector.broadcast %cst_17 : f32 to vector<1x256xf32>
      %41 = arith.minimumf %40, %39 : vector<1x256xf32>
      %cst_18 = arith.constant 1.000000e+00 : f32
      %42 = vector.broadcast %cst_18 : f32 to vector<1x256xf32>
      %43 = arith.addf %25, %42 : vector<1x256xf32>
      %cst_19 = arith.constant 2.500000e+00 : f32
      %44 = vector.broadcast %cst_19 : f32 to vector<1x256xf32>
      %45 = arith.mulf %43, %44 : vector<1x256xf32>
      %cst_20 = arith.constant 0.000000e+00 : f32
      %cst_21 = arith.constant 5.000000e+00 : f32
      %46 = vector.broadcast %cst_20 : f32 to vector<1x256xf32>
      %47 = arith.maximumf %46, %45 : vector<1x256xf32>
      %48 = vector.broadcast %cst_21 : f32 to vector<1x256xf32>
      %49 = arith.minimumf %48, %47 : vector<1x256xf32>
      %50 = math.floor %33 : vector<1x256xf32>
      %51 = math.floor %41 : vector<1x256xf32>
      %52 = math.floor %49 : vector<1x256xf32>
      %53 = arith.subf %33, %50 : vector<1x256xf32>
      %54 = arith.subf %41, %51 : vector<1x256xf32>
      %55 = arith.subf %49, %52 : vector<1x256xf32>
      %56 = arith.fptosi %50 : vector<1x256xf32> to vector<1x256xi32>
      %57 = arith.fptosi %51 : vector<1x256xf32> to vector<1x256xi32>
      %58 = arith.fptosi %52 : vector<1x256xf32> to vector<1x256xi32>
      %c1_i32 = arith.constant 1 : i32
      %59 = vector.broadcast %c1_i32 : i32 to vector<1x256xi32>
      %60 = arith.addi %56, %59 : vector<1x256xi32>
      %c13_i32 = arith.constant 13 : i32
      %61 = vector.broadcast %c13_i32 : i32 to vector<1x256xi32>
      %62 = arith.minsi %60, %61 : vector<1x256xi32>
      %c1_i32_22 = arith.constant 1 : i32
      %63 = vector.broadcast %c1_i32_22 : i32 to vector<1x256xi32>
      %64 = arith.addi %57, %63 : vector<1x256xi32>
      %c9_i32 = arith.constant 9 : i32
      %65 = vector.broadcast %c9_i32 : i32 to vector<1x256xi32>
      %66 = arith.minsi %64, %65 : vector<1x256xi32>
      %c1_i32_23 = arith.constant 1 : i32
      %67 = vector.broadcast %c1_i32_23 : i32 to vector<1x256xi32>
      %68 = arith.addi %58, %67 : vector<1x256xi32>
      %c5_i32 = arith.constant 5 : i32
      %69 = vector.broadcast %c5_i32 : i32 to vector<1x256xi32>
      %70 = arith.minsi %68, %69 : vector<1x256xi32>
      %cst_24 = arith.constant 1.000000e+00 : f32
      %71 = vector.broadcast %cst_24 : f32 to vector<1x256xf32>
      %72 = arith.subf %71, %53 : vector<1x256xf32>
      %cst_25 = arith.constant 1.000000e+00 : f32
      %73 = vector.broadcast %cst_25 : f32 to vector<1x256xf32>
      %74 = arith.subf %73, %54 : vector<1x256xf32>
      %cst_26 = arith.constant 1.000000e+00 : f32
      %75 = vector.broadcast %cst_26 : f32 to vector<1x256xf32>
      %76 = arith.subf %75, %55 : vector<1x256xf32>
      %c140_i32 = arith.constant 140 : i32
      %77 = vector.broadcast %c140_i32 : i32 to vector<1x256xi32>
      %78 = arith.muli %58, %77 : vector<1x256xi32>
      %c14_i32 = arith.constant 14 : i32
      %79 = vector.broadcast %c14_i32 : i32 to vector<1x256xi32>
      %80 = arith.muli %57, %79 : vector<1x256xi32>
      %81 = arith.addi %78, %80 : vector<1x256xi32>
      %82 = arith.addi %81, %56 : vector<1x256xi32>
      %83 = arith.mulf %76, %74 : vector<1x256xf32>
      %84 = arith.mulf %83, %72 : vector<1x256xf32>
      %c140_i32_27 = arith.constant 140 : i32
      %85 = vector.broadcast %c140_i32_27 : i32 to vector<1x256xi32>
      %86 = arith.muli %58, %85 : vector<1x256xi32>
      %c14_i32_28 = arith.constant 14 : i32
      %87 = vector.broadcast %c14_i32_28 : i32 to vector<1x256xi32>
      %88 = arith.muli %57, %87 : vector<1x256xi32>
      %89 = arith.addi %86, %88 : vector<1x256xi32>
      %90 = arith.addi %89, %62 : vector<1x256xi32>
      %91 = arith.mulf %76, %74 : vector<1x256xf32>
      %92 = arith.mulf %91, %53 : vector<1x256xf32>
      %c140_i32_29 = arith.constant 140 : i32
      %93 = vector.broadcast %c140_i32_29 : i32 to vector<1x256xi32>
      %94 = arith.muli %58, %93 : vector<1x256xi32>
      %c14_i32_30 = arith.constant 14 : i32
      %95 = vector.broadcast %c14_i32_30 : i32 to vector<1x256xi32>
      %96 = arith.muli %66, %95 : vector<1x256xi32>
      %97 = arith.addi %94, %96 : vector<1x256xi32>
      %98 = arith.addi %97, %56 : vector<1x256xi32>
      %99 = arith.mulf %76, %54 : vector<1x256xf32>
      %100 = arith.mulf %99, %72 : vector<1x256xf32>
      %c140_i32_31 = arith.constant 140 : i32
      %101 = vector.broadcast %c140_i32_31 : i32 to vector<1x256xi32>
      %102 = arith.muli %58, %101 : vector<1x256xi32>
      %c14_i32_32 = arith.constant 14 : i32
      %103 = vector.broadcast %c14_i32_32 : i32 to vector<1x256xi32>
      %104 = arith.muli %66, %103 : vector<1x256xi32>
      %105 = arith.addi %102, %104 : vector<1x256xi32>
      %106 = arith.addi %105, %62 : vector<1x256xi32>
      %107 = arith.mulf %76, %54 : vector<1x256xf32>
      %108 = arith.mulf %107, %53 : vector<1x256xf32>
      %c140_i32_33 = arith.constant 140 : i32
      %109 = vector.broadcast %c140_i32_33 : i32 to vector<1x256xi32>
      %110 = arith.muli %70, %109 : vector<1x256xi32>
      %c14_i32_34 = arith.constant 14 : i32
      %111 = vector.broadcast %c14_i32_34 : i32 to vector<1x256xi32>
      %112 = arith.muli %57, %111 : vector<1x256xi32>
      %113 = arith.addi %110, %112 : vector<1x256xi32>
      %114 = arith.addi %113, %56 : vector<1x256xi32>
      %115 = arith.mulf %55, %74 : vector<1x256xf32>
      %116 = arith.mulf %115, %72 : vector<1x256xf32>
      %c140_i32_35 = arith.constant 140 : i32
      %117 = vector.broadcast %c140_i32_35 : i32 to vector<1x256xi32>
      %118 = arith.muli %70, %117 : vector<1x256xi32>
      %c14_i32_36 = arith.constant 14 : i32
      %119 = vector.broadcast %c14_i32_36 : i32 to vector<1x256xi32>
      %120 = arith.muli %57, %119 : vector<1x256xi32>
      %121 = arith.addi %118, %120 : vector<1x256xi32>
      %122 = arith.addi %121, %62 : vector<1x256xi32>
      %123 = arith.mulf %55, %74 : vector<1x256xf32>
      %124 = arith.mulf %123, %53 : vector<1x256xf32>
      %c140_i32_37 = arith.constant 140 : i32
      %125 = vector.broadcast %c140_i32_37 : i32 to vector<1x256xi32>
      %126 = arith.muli %70, %125 : vector<1x256xi32>
      %c14_i32_38 = arith.constant 14 : i32
      %127 = vector.broadcast %c14_i32_38 : i32 to vector<1x256xi32>
      %128 = arith.muli %66, %127 : vector<1x256xi32>
      %129 = arith.addi %126, %128 : vector<1x256xi32>
      %130 = arith.addi %129, %56 : vector<1x256xi32>
      %131 = arith.mulf %55, %54 : vector<1x256xf32>
      %132 = arith.mulf %131, %72 : vector<1x256xf32>
      %c140_i32_39 = arith.constant 140 : i32
      %133 = vector.broadcast %c140_i32_39 : i32 to vector<1x256xi32>
      %134 = arith.muli %70, %133 : vector<1x256xi32>
      %c14_i32_40 = arith.constant 14 : i32
      %135 = vector.broadcast %c14_i32_40 : i32 to vector<1x256xi32>
      %136 = arith.muli %66, %135 : vector<1x256xi32>
      %137 = arith.addi %134, %136 : vector<1x256xi32>
      %138 = arith.addi %137, %62 : vector<1x256xi32>
      %139 = arith.mulf %55, %54 : vector<1x256xf32>
      %140 = arith.mulf %139, %53 : vector<1x256xf32>
      %141 = tpu.concatenate %82, %90, %98, %106, %114, %122, %130, %138 in 0 : vector<1x256xi32>, vector<1x256xi32>, vector<1x256xi32>, vector<1x256xi32>, vector<1x256xi32>, vector<1x256xi32>, vector<1x256xi32>, vector<1x256xi32> -> vector<8x256xi32>
      %c0_41 = arith.constant 0 : index
      %c0_42 = arith.constant 0 : index
      %142 = vector.load %arg10[%c0_41, %c0_42] : memref<8x256xi32, #tpu.memory_space<vmem>>, vector<8x256xi32>
      tpu.vector_store %arg10[%c0_41, %c0_42], %141 {strides = array<i32>} : memref<8x256xi32, #tpu.memory_space<vmem>>, vector<8x256xi32>,
      %143 = tpu.concatenate %84, %92, %100, %108, %116, %124, %132, %140 in 0 : vector<1x256xf32>, vector<1x256xf32>, vector<1x256xf32>, vector<1x256xf32>, vector<1x256xf32>, vector<1x256xf32>, vector<1x256xf32>, vector<1x256xf32> -> vector<8x256xf32>
      %c0_43 = arith.constant 0 : index
      %c0_44 = arith.constant 0 : index
      %144 = vector.load %arg11[%c0_43, %c0_44] : memref<8x256xf32, #tpu.memory_space<vmem>>, vector<8x256xf32>
      tpu.vector_store %arg11[%c0_43, %c0_44], %143 {strides = array<i32>} : memref<8x256xf32, #tpu.memory_space<vmem>>, vector<8x256xf32>,
    } else {
    }
    %3 = arith.index_cast %arg0 : i32 to index
    %4 = arith.index_cast %arg1 : i32 to index
    %5 = memref.load %arg3[%3, %4] : memref<2x4xi32, #tpu.memory_space<smem>>
    %6 = arith.addi %5, %arg2 : i32
    %7 = arith.index_cast %arg0 : i32 to index
    %8 = arith.index_cast %arg1 : i32 to index
    %9 = memref.load %arg4[%7, %8] : memref<2x4xi32, #tpu.memory_space<smem>>
    %10 = arith.cmpi sle, %6, %9 : i32
    %11 = arith.extui %10 : i1 to i32
    %c0_i32_1 = arith.constant 0 : i32
    %12 = arith.cmpi ne, %11, %c0_i32_1 : i32
    scf.if %12 {
      %c128_i32 = arith.constant 128 : i32
      %16 = arith.muli %6, %c128_i32 : i32
      %17 = tpu.iota {dimensions = array<i32: 0>} : vector<128x256xi32>
      %c0 = arith.constant 0 : index
      %c0_3 = arith.constant 0 : index
      %18 = vector.load %arg10[%c0, %c0_3] : memref<8x256xi32, #tpu.memory_space<vmem>>, vector<1x256xi32>
      %19 = vector.broadcast %16 : i32 to vector<1x256xi32>
      %20 = arith.subi %18, %19 : vector<1x256xi32>
      %21 = vector.broadcast %20 : vector<1x256xi32> to vector<128x256xi32>
      %22 = arith.cmpi eq, %17, %21 : vector<128x256xi32>
      %c0_4 = arith.constant 0 : index
      %c0_5 = arith.constant 0 : index
      %23 = vector.load %arg11[%c0_4, %c0_5] : memref<8x256xf32, #tpu.memory_space<vmem>>, vector<1x256xf32>
      %cst = arith.constant 0.000000e+00 : f32
      %24 = vector.shape_cast %23 : vector<1x256xf32> to vector<1x256xf32>
      %25 = vector.broadcast %24 : vector<1x256xf32> to vector<128x256xf32>
      %26 = vector.broadcast %cst : f32 to vector<128x256xf32>
      %27 = arith.select %22, %25, %26 : vector<128x256xi1>, vector<128x256xf32>
      %c1 = arith.constant 1 : index
      %c0_6 = arith.constant 0 : index
      %28 = vector.load %arg10[%c1, %c0_6] : memref<8x256xi32, #tpu.memory_space<vmem>>, vector<1x256xi32>
      %29 = vector.broadcast %16 : i32 to vector<1x256xi32>
      %30 = arith.subi %28, %29 : vector<1x256xi32>
      %31 = vector.broadcast %30 : vector<1x256xi32> to vector<128x256xi32>
      %32 = arith.cmpi eq, %17, %31 : vector<128x256xi32>
      %c1_7 = arith.constant 1 : index
      %c0_8 = arith.constant 0 : index
      %33 = vector.load %arg11[%c1_7, %c0_8] : memref<8x256xf32, #tpu.memory_space<vmem>>, vector<1x256xf32>
      %cst_9 = arith.constant 0.000000e+00 : f32
      %34 = vector.shape_cast %33 : vector<1x256xf32> to vector<1x256xf32>
      %35 = vector.broadcast %34 : vector<1x256xf32> to vector<128x256xf32>
      %36 = vector.broadcast %cst_9 : f32 to vector<128x256xf32>
      %37 = arith.select %32, %35, %36 : vector<128x256xi1>, vector<128x256xf32>
      %38 = arith.addf %27, %37 : vector<128x256xf32>
      %c2 = arith.constant 2 : index
      %c0_10 = arith.constant 0 : index
      %39 = vector.load %arg10[%c2, %c0_10] : memref<8x256xi32, #tpu.memory_space<vmem>>, vector<1x256xi32>
      %40 = vector.broadcast %16 : i32 to vector<1x256xi32>
      %41 = arith.subi %39, %40 : vector<1x256xi32>
      %42 = vector.broadcast %41 : vector<1x256xi32> to vector<128x256xi32>
      %43 = arith.cmpi eq, %17, %42 : vector<128x256xi32>
      %c2_11 = arith.constant 2 : index
      %c0_12 = arith.constant 0 : index
      %44 = vector.load %arg11[%c2_11, %c0_12] : memref<8x256xf32, #tpu.memory_space<vmem>>, vector<1x256xf32>
      %cst_13 = arith.constant 0.000000e+00 : f32
      %45 = vector.shape_cast %44 : vector<1x256xf32> to vector<1x256xf32>
      %46 = vector.broadcast %45 : vector<1x256xf32> to vector<128x256xf32>
      %47 = vector.broadcast %cst_13 : f32 to vector<128x256xf32>
      %48 = arith.select %43, %46, %47 : vector<128x256xi1>, vector<128x256xf32>
      %49 = arith.addf %38, %48 : vector<128x256xf32>
      %c3 = arith.constant 3 : index
      %c0_14 = arith.constant 0 : index
      %50 = vector.load %arg10[%c3, %c0_14] : memref<8x256xi32, #tpu.memory_space<vmem>>, vector<1x256xi32>
      %51 = vector.broadcast %16 : i32 to vector<1x256xi32>
      %52 = arith.subi %50, %51 : vector<1x256xi32>
      %53 = vector.broadcast %52 : vector<1x256xi32> to vector<128x256xi32>
      %54 = arith.cmpi eq, %17, %53 : vector<128x256xi32>
      %c3_15 = arith.constant 3 : index
      %c0_16 = arith.constant 0 : index
      %55 = vector.load %arg11[%c3_15, %c0_16] : memref<8x256xf32, #tpu.memory_space<vmem>>, vector<1x256xf32>
      %cst_17 = arith.constant 0.000000e+00 : f32
      %56 = vector.shape_cast %55 : vector<1x256xf32> to vector<1x256xf32>
      %57 = vector.broadcast %56 : vector<1x256xf32> to vector<128x256xf32>
      %58 = vector.broadcast %cst_17 : f32 to vector<128x256xf32>
      %59 = arith.select %54, %57, %58 : vector<128x256xi1>, vector<128x256xf32>
      %60 = arith.addf %49, %59 : vector<128x256xf32>
      %c4 = arith.constant 4 : index
      %c0_18 = arith.constant 0 : index
      %61 = vector.load %arg10[%c4, %c0_18] : memref<8x256xi32, #tpu.memory_space<vmem>>, vector<1x256xi32>
      %62 = vector.broadcast %16 : i32 to vector<1x256xi32>
      %63 = arith.subi %61, %62 : vector<1x256xi32>
      %64 = vector.broadcast %63 : vector<1x256xi32> to vector<128x256xi32>
      %65 = arith.cmpi eq, %17, %64 : vector<128x256xi32>
      %c4_19 = arith.constant 4 : index
      %c0_20 = arith.constant 0 : index
      %66 = vector.load %arg11[%c4_19, %c0_20] : memref<8x256xf32, #tpu.memory_space<vmem>>, vector<1x256xf32>
      %cst_21 = arith.constant 0.000000e+00 : f32
      %67 = vector.shape_cast %66 : vector<1x256xf32> to vector<1x256xf32>
      %68 = vector.broadcast %67 : vector<1x256xf32> to vector<128x256xf32>
      %69 = vector.broadcast %cst_21 : f32 to vector<128x256xf32>
      %70 = arith.select %65, %68, %69 : vector<128x256xi1>, vector<128x256xf32>
      %71 = arith.addf %60, %70 : vector<128x256xf32>
      %c5 = arith.constant 5 : index
      %c0_22 = arith.constant 0 : index
      %72 = vector.load %arg10[%c5, %c0_22] : memref<8x256xi32, #tpu.memory_space<vmem>>, vector<1x256xi32>
      %73 = vector.broadcast %16 : i32 to vector<1x256xi32>
      %74 = arith.subi %72, %73 : vector<1x256xi32>
      %75 = vector.broadcast %74 : vector<1x256xi32> to vector<128x256xi32>
      %76 = arith.cmpi eq, %17, %75 : vector<128x256xi32>
      %c5_23 = arith.constant 5 : index
      %c0_24 = arith.constant 0 : index
      %77 = vector.load %arg11[%c5_23, %c0_24] : memref<8x256xf32, #tpu.memory_space<vmem>>, vector<1x256xf32>
      %cst_25 = arith.constant 0.000000e+00 : f32
      %78 = vector.shape_cast %77 : vector<1x256xf32> to vector<1x256xf32>
      %79 = vector.broadcast %78 : vector<1x256xf32> to vector<128x256xf32>
      %80 = vector.broadcast %cst_25 : f32 to vector<128x256xf32>
      %81 = arith.select %76, %79, %80 : vector<128x256xi1>, vector<128x256xf32>
      %82 = arith.addf %71, %81 : vector<128x256xf32>
      %c6 = arith.constant 6 : index
      %c0_26 = arith.constant 0 : index
      %83 = vector.load %arg10[%c6, %c0_26] : memref<8x256xi32, #tpu.memory_space<vmem>>, vector<1x256xi32>
      %84 = vector.broadcast %16 : i32 to vector<1x256xi32>
      %85 = arith.subi %83, %84 : vector<1x256xi32>
      %86 = vector.broadcast %85 : vector<1x256xi32> to vector<128x256xi32>
      %87 = arith.cmpi eq, %17, %86 : vector<128x256xi32>
      %c6_27 = arith.constant 6 : index
      %c0_28 = arith.constant 0 : index
      %88 = vector.load %arg11[%c6_27, %c0_28] : memref<8x256xf32, #tpu.memory_space<vmem>>, vector<1x256xf32>
      %cst_29 = arith.constant 0.000000e+00 : f32
      %89 = vector.shape_cast %88 : vector<1x256xf32> to vector<1x256xf32>
      %90 = vector.broadcast %89 : vector<1x256xf32> to vector<128x256xf32>
      %91 = vector.broadcast %cst_29 : f32 to vector<128x256xf32>
      %92 = arith.select %87, %90, %91 : vector<128x256xi1>, vector<128x256xf32>
      %93 = arith.addf %82, %92 : vector<128x256xf32>
      %c7 = arith.constant 7 : index
      %c0_30 = arith.constant 0 : index
      %94 = vector.load %arg10[%c7, %c0_30] : memref<8x256xi32, #tpu.memory_space<vmem>>, vector<1x256xi32>
      %95 = vector.broadcast %16 : i32 to vector<1x256xi32>
      %96 = arith.subi %94, %95 : vector<1x256xi32>
      %97 = vector.broadcast %96 : vector<1x256xi32> to vector<128x256xi32>
      %98 = arith.cmpi eq, %17, %97 : vector<128x256xi32>
      %c7_31 = arith.constant 7 : index
      %c0_32 = arith.constant 0 : index
      %99 = vector.load %arg11[%c7_31, %c0_32] : memref<8x256xf32, #tpu.memory_space<vmem>>, vector<1x256xf32>
      %cst_33 = arith.constant 0.000000e+00 : f32
      %100 = vector.shape_cast %99 : vector<1x256xf32> to vector<1x256xf32>
      %101 = vector.broadcast %100 : vector<1x256xf32> to vector<128x256xf32>
      %102 = vector.broadcast %cst_33 : f32 to vector<128x256xf32>
      %103 = arith.select %98, %101, %102 : vector<128x256xi1>, vector<128x256xf32>
      %104 = arith.addf %93, %103 : vector<128x256xf32>
      %c0_34 = arith.constant 0 : index
      %c0_35 = arith.constant 0 : index
      %c0_36 = arith.constant 0 : index
      %105 = vector.load %arg5[%c0_34, %c0_35, %c0_36] : memref<1x4x128xf32, #tpu.memory_space<vmem>>, vector<1x4x128xf32>
      %106 = vector.shape_cast %105 : vector<1x4x128xf32> to vector<4x128xf32>
      %c0_37 = arith.constant 0 : index
      %c0_38 = arith.constant 0 : index
      %107 = vector.load %arg9[%c0_37, %c0_38] : memref<4x256xf32, #tpu.memory_space<vmem>>, vector<4x256xf32>
      %cst_39 = arith.constant dense<0.000000e+00> : vector<4x256xf32>
      %108 = tpu.matmul %106, %104, %cst_39 {dimension_numbers = #tpu.dot_dimension_numbers<[1], [0], [0], [1], [0, 0, 1, 1], [], []>} : vector<4x128xf32>, vector<128x256xf32>, vector<4x256xf32> -> vector<4x256xf32>
      %109 = arith.addf %107, %108 : vector<4x256xf32>
      %c0_40 = arith.constant 0 : index
      %c0_41 = arith.constant 0 : index
      %110 = vector.load %arg9[%c0_40, %c0_41] : memref<4x256xf32, #tpu.memory_space<vmem>>, vector<4x256xf32>
      tpu.vector_store %arg9[%c0_40, %c0_41], %109 {strides = array<i32>} : memref<4x256xf32, #tpu.memory_space<vmem>>, vector<4x256xf32>,
    } else {
    }
    %c6_i32 = arith.constant 6 : i32
    %13 = arith.cmpi eq, %arg2, %c6_i32 : i32
    %14 = arith.extui %13 : i1 to i32
    %c0_i32_2 = arith.constant 0 : i32
    %15 = arith.cmpi ne, %14, %c0_i32_2 : i32
    scf.if %15 {
      %c0 = arith.constant 0 : index
      %c0_3 = arith.constant 0 : index
      %16 = vector.load %arg9[%c0, %c0_3] : memref<4x256xf32, #tpu.memory_space<vmem>>, vector<4x256xf32>
      %c0_4 = arith.constant 0 : index
      %c0_5 = arith.constant 0 : index
      %c0_6 = arith.constant 0 : index
      %17 = vector.load %arg8[%c0_4, %c0_5, %c0_6] : memref<1x4x256xf32, #tpu.memory_space<vmem>>, vector<1x4x256xf32>
      %18 = vector.shape_cast %17 : vector<1x4x256xf32> to vector<4x256xf32>
      %19 = vector.shape_cast %16 : vector<4x256xf32> to vector<1x4x256xf32>
      tpu.vector_store %arg8[%c0_4, %c0_5, %c0_6], %19 {strides = array<i32>} : memref<1x4x256xf32, #tpu.memory_space<vmem>>, vector<1x4x256xf32>,
    } else {
    }
    return
  }
  func.func @transform_0(%arg0: i32, %arg1: i32, %arg2: i32, %arg3: memref<2x4xi32, #tpu.memory_space<smem>>, %arg4: memref<2x4xi32, #tpu.memory_space<smem>>) -> (i32, i32, i32) {
    %0 = arith.index_cast %arg0 : i32 to index
    %1 = arith.index_cast %arg1 : i32 to index
    %2 = memref.load %arg3[%0, %1] : memref<2x4xi32, #tpu.memory_space<smem>>
    %3 = arith.addi %2, %arg2 : i32
    %4 = arith.index_cast %arg0 : i32 to index
    %5 = arith.index_cast %arg1 : i32 to index
    %6 = memref.load %arg4[%4, %5] : memref<2x4xi32, #tpu.memory_space<smem>>
    %7 = arith.minsi %3, %6 : i32
    %c0_i32 = arith.constant 0 : i32
    %c0_i32_0 = arith.constant 0 : i32
    return %arg0, %c0_i32, %7 : i32, i32, i32
  }
  func.func @transform_1(%arg0: i32, %arg1: i32, %arg2: i32, %arg3: memref<2x4xi32, #tpu.memory_space<smem>>, %arg4: memref<2x4xi32, #tpu.memory_space<smem>>) -> (i32, i32, i32) {
    %c0_i32 = arith.constant 0 : i32
    %c0_i32_0 = arith.constant 0 : i32
    return %arg0, %c0_i32, %arg1 : i32, i32, i32
  }
  func.func @transform_2(%arg0: i32, %arg1: i32, %arg2: i32, %arg3: memref<2x4xi32, #tpu.memory_space<smem>>, %arg4: memref<2x4xi32, #tpu.memory_space<smem>>) -> (i32, i32, i32) {
    %c0_i32 = arith.constant 0 : i32
    %c0_i32_0 = arith.constant 0 : i32
    return %arg0, %c0_i32, %arg1 : i32, i32, i32
  }
  func.func @transform_3(%arg0: i32, %arg1: i32, %arg2: i32, %arg3: memref<2x4xi32, #tpu.memory_space<smem>>, %arg4: memref<2x4xi32, #tpu.memory_space<smem>>) -> (i32, i32, i32) {
    %c0_i32 = arith.constant 0 : i32
    %c0_i32_0 = arith.constant 0 : i32
    return %arg0, %c0_i32, %arg1 : i32, i32, i32
  }
}

</mosaic_0001>

<llo_original>
// kernel: tpu_custom_call.1
$region0: #{tpu_custom_call.1}
  #allocation0 [shape = 'u32[]', space=smem, size = 0x4, offset = 0x4, fixed_abs, tag = 'smem constant byte address 0x4 - core index']
  #allocation1 [shape = 'u32[72,128]{1,0:T(1,128)}', space=vmem, size = 0x9000, scoped, tag = 'internal scratch']
  #allocation2 [shape = 'f32[4,256]{1,0:T(4,128)}', space=vmem, size = 0x1000, scoped, tag = 'scratch operand']
  #allocation3 [shape = 's32[8,256]{1,0:T(8,128)}', space=vmem, size = 0x2000, scoped, tag = 'scratch operand']
  #allocation4 [shape = 'f32[8,256]{1,0:T(8,128)}', space=vmem, size = 0x2000, scoped, tag = 'scratch operand']
  #allocation5 [shape = 's32[1]{0}', space=sflag, size = 0x4, scoped, tag = 'scoped memory for tpu_custom_call.1']
  #allocation6 [shape = 'u8[1024]{0}', space=smem, size = 0x400, scoped, tag = 'prefetched SMEM operand 0']
  #allocation7 [shape = 'u8[1024]{0}', space=smem, size = 0x400, scoped, tag = 'prefetched SMEM operand 1']
  %s0 = inlined_call_operand.vmem [shape: s32[2,4], index: 0, kind: input, shape index: {}]
  %s1 = inlined_call_operand.vmem [shape: s32[2,4], index: 1, kind: input, shape index: {}]
  %s2 = inlined_call_operand.vmem [shape: f32[2,4,896], index: 2, kind: input, shape index: {}]
  %s3 = inlined_call_operand.vmem [shape: f32[2,3,1024], index: 3, kind: input, shape index: {}]
  %s4 = inlined_call_operand.vmem [shape: f32[2,3,1024], index: 4, kind: input, shape index: {}]
  %s5 = inlined_call_operand.hbm [shape: f32[2,4,1024], index: 5, kind: output, shape index: {}]
  %s6 = sld [smem:[#allocation0]]
  $region57: #{tpu_custom_call.1} parent=0
    _
  %s8 = ssub.s32 1, %s6
  %s9 = scalar_select 0, %s8, %s6
  %s11 = sshll.u32 %s0, 4
  %s12 = int_to_ptr.vmem [resolvable:$true] %s11
  %14 = dma.vmem_to_smem %s12, 32, [#allocation6], [#allocation5]
  %s16 = sshll.u32 %s1, 4
  %s17 = int_to_ptr.vmem [resolvable:$true] %s16
  %19 = dma.vmem_to_smem %s17, 32, [#allocation7], [#allocation5]
  %21 = dma.done [#allocation5], 64
  %22 = sfence
  $region1: #{tpu_custom_call.1} parent=0
    #allocation8 [shape = 'u8[8192]{0}', space=vmem, size = 0x2000, scoped, tag = 'output window, operand 0']
    #allocation9 [shape = 's32[2]{0}', space=sflag, size = 0x8, scoped, tag = 'scoped memory for tpu_custom_call.1']
    %23 = vsyncpa [#allocation9], 0
    %s24 = scalar_lea.sflag [#allocation9], 1
    %25 = vsyncpa %s24, 0
    loop: start=0, step=1, limit=58
    $region2: #{tpu_custom_call.1} parent=1 // loop_pre_header
      _
    $region3: #{tpu_custom_call.1} parent=1 // loop_header
      %s27 = sphi 0, %s31
      %p28 = scmp.ge.s32.totalorder %s27, 58
      %s34 = sphi 0, %s53
      %s35 = sphi 0, %s49
      %s36 = sphi 0, %s45
      %s37 = sphi 0, %s34
      %s38 = sphi 0, %s35
      %s39 = sphi 0, %s36
      %s40 = sphi 0, %s37
      %s41 = sphi 0, %s38
      %s42 = sphi 0, %s39
      %s82 = sphi 0, %s84
      %s85 = sphi 0, %s82
      %s86 = sphi 0, %s85
      %s102 = sphi 0, %s86
      %s110 = sphi 0, %s112
      %s113 = sphi 0, %s110
      %s114 = sphi 0, %s113
      %s130 = sphi 0, %s114
      %s138 = sphi 0, %s140
      %s141 = sphi 0, %s138
      %s142 = sphi 0, %s141
      %s158 = sphi 0, %s142
      %s166 = sphi 0, %s168
      %s169 = sphi 0, %s166
      %s170 = sphi 0, %s169
      %s186 = sphi 0, %s170
    $region4: #{tpu_custom_call.1} parent=1 // loop_header_branch
      %30 = sbr.rel (%p28) target = $region8
    $region5: #{tpu_custom_call.1} parent=1 // loop_body
      %s32 = ssub.s32 %s27, 1
      %s33 = ssub.s32 %s27, 2
      %s43 = sadd.s32 1, %s36
      %p44 = scmp.ge.s32.totalorder %s43, 7
      %s45 = scalar_select %p44, 0, %s43
      %s46 = sadd.s32 1, %s35
      %s47 = scalar_select %p44, %s46, %s35
      %p48 = scmp.ge.s32.totalorder %s47, 4
      %s49 = scalar_select %p48, 0, %s47
      %s50 = sadd.s32 1, %s34
      %s51 = scalar_select %p48, %s50, %s34
      %p52 = scmp.ge.s32.totalorder %s51, 2
      %s53 = scalar_select %p52, 0, %s51
      %s54 = sshra.s32 %s35, 7
      %s55 = sand.u32 %s35, 127
      %s56 = sadd.s32 %s54, %s34
      %s57 = smul.u32 %s56, 128
      %s58 = sshra.s32 %s35, 7
      %s59 = sand.u32 %s35, 127
      %s60 = sadd.s32 %s57, %s59
      %s61 = sld [smem:[#allocation6 + %s60]]
      %s62 = sadd.s32 %s61, %s36
      %s63 = sld [smem:[#allocation7 + %s60]]
      %p64 = scmp.lt.s32.totalorder %s62, %s63
      %s65 = scalar_select %p64, %s62, %s63
      %s66 = sshra.s32 %s49, 7
      %s67 = sand.u32 %s49, 127
      %s68 = sadd.s32 %s66, %s53
      %s69 = smul.u32 %s68, 128
      %s70 = sshra.s32 %s49, 7
      %s71 = sand.u32 %s49, 127
      %s72 = sadd.s32 %s69, %s71
      %s73 = sld [smem:[#allocation6 + %s72]]
      %s74 = sadd.s32 %s73, %s45
      %s75 = sld [smem:[#allocation7 + %s72]]
      %p76 = scmp.lt.s32.totalorder %s74, %s75
      %s77 = scalar_select %p76, %s74, %s75
      %s78 = ssub.s32 %s34, %s53
      %s79 = ssub.s32 %s65, %s77
      %s80 = sor.u32 %s78, %s79
      %p81 = scmp.eq.s32.totalorder %s80, 0
      %s83 = sadd.s32 %s82, 1
      %s84 = scalar_select %p81, %s82, %s83
      %p87 = pneg %p81
      %p88 = scmp.eq.s32.totalorder %s27, 55
      %p89 = por %p87, %p88
      %p90 = scmp.ne.s32.totalorder %s82, %s85
      %p91 = scmp.eq.s32.totalorder %s27, 0
      %p92 = por %p90, %p91
      %p93 = scmp.ne.s32.totalorder %s82, %s85
      %p94 = scmp.eq.s32.totalorder %s32, 55
      %p95 = por %p93, %p94
      %p96 = scmp.ne.s32.totalorder %s85, %s86
      %p97 = scmp.eq.s32.totalorder %s32, 0
      %p98 = por %p96, %p97
      %p99 = scmp.ne.s32.totalorder %s85, %s86
      %p100 = scmp.eq.s32.totalorder %s33, 55
      %p101 = por %p99, %p100
      %p103 = scmp.ne.s32.totalorder %s86, %s102
      %p104 = scmp.eq.s32.totalorder %s33, 0
      %p105 = por %p103, %p104
      %s106 = ssub.s32 %s34, %s53
      %s107 = ssub.s32 %s35, %s49
      %s108 = sor.u32 %s106, %s107
      %p109 = scmp.eq.s32.totalorder %s108, 0
      %s111 = sadd.s32 %s110, 1
      %s112 = scalar_select %p109, %s110, %s111
      %p115 = pneg %p109
      %p116 = scmp.eq.s32.totalorder %s27, 55
      %p117 = por %p115, %p116
      %p118 = scmp.ne.s32.totalorder %s110, %s113
      %p119 = scmp.eq.s32.totalorder %s27, 0
      %p120 = por %p118, %p119
      %p121 = scmp.ne.s32.totalorder %s110, %s113
      %p122 = scmp.eq.s32.totalorder %s32, 55
      %p123 = por %p121, %p122
      %p124 = scmp.ne.s32.totalorder %s113, %s114
      %p125 = scmp.eq.s32.totalorder %s32, 0
      %p126 = por %p124, %p125
      %p127 = scmp.ne.s32.totalorder %s113, %s114
      %p128 = scmp.eq.s32.totalorder %s33, 55
      %p129 = por %p127, %p128
      %p131 = scmp.ne.s32.totalorder %s114, %s130
      %p132 = scmp.eq.s32.totalorder %s33, 0
      %p133 = por %p131, %p132
      %s134 = ssub.s32 %s34, %s53
      %s135 = ssub.s32 %s35, %s49
      %s136 = sor.u32 %s134, %s135
      %p137 = scmp.eq.s32.totalorder %s136, 0
      %s139 = sadd.s32 %s138, 1
      %s140 = scalar_select %p137, %s138, %s139
      %p143 = pneg %p137
      %p144 = scmp.eq.s32.totalorder %s27, 55
      %p145 = por %p143, %p144
      %p146 = scmp.ne.s32.totalorder %s138, %s141
      %p147 = scmp.eq.s32.totalorder %s27, 0
      %p148 = por %p146, %p147
      %p149 = scmp.ne.s32.totalorder %s138, %s141
      %p150 = scmp.eq.s32.totalorder %s32, 55
      %p151 = por %p149, %p150
      %p152 = scmp.ne.s32.totalorder %s141, %s142
      %p153 = scmp.eq.s32.totalorder %s32, 0
      %p154 = por %p152, %p153
      %p155 = scmp.ne.s32.totalorder %s141, %s142
      %p156 = scmp.eq.s32.totalorder %s33, 55
      %p157 = por %p155, %p156
      %p159 = scmp.ne.s32.totalorder %s142, %s158
      %p160 = scmp.eq.s32.totalorder %s33, 0
      %p161 = por %p159, %p160
      %s162 = ssub.s32 %s34, %s53
      %s163 = ssub.s32 %s35, %s49
      %s164 = sor.u32 %s162, %s163
      %p165 = scmp.eq.s32.totalorder %s164, 0
      %s167 = sadd.s32 %s166, 1
      %s168 = scalar_select %p165, %s166, %s167
      %p171 = pneg %p165
      %p172 = scmp.eq.s32.totalorder %s27, 55
      %p173 = por %p171, %p172
      %p174 = scmp.ne.s32.totalorder %s166, %s169
      %p175 = scmp.eq.s32.totalorder %s27, 0
      %p176 = por %p174, %p175
      %p177 = scmp.ne.s32.totalorder %s166, %s169
      %p178 = scmp.eq.s32.totalorder %s32, 55
      %p179 = por %p177, %p178
      %p180 = scmp.ne.s32.totalorder %s169, %s170
      %p181 = scmp.eq.s32.totalorder %s32, 0
      %p182 = por %p180, %p181
      %p183 = scmp.ne.s32.totalorder %s169, %s170
      %p184 = scmp.eq.s32.totalorder %s33, 55
      %p185 = por %p183, %p184
      %p187 = scmp.ne.s32.totalorder %s170, %s186
      %p188 = scmp.eq.s32.totalorder %s33, 0
      %p189 = por %p187, %p188
      %p190 = scmp.le.s32.totalorder 1, %s27
      %p191 = scmp.lt.s32.totalorder %s27, 57
      %p192 = pnand %p190, %p191
      %p193 = pneg %p192
      // Predicated region
      $region9: #{tpu_custom_call.1} parent=5 // pred_check
        _
      $region10: #{tpu_custom_call.1} parent=5 // pred_check_branch
        %195 = sbr.rel (%p192) target = $region12
      $region11: #{tpu_custom_call.1} parent=5 // pred_region
        %s196 = ssub.s32 %s27, 1
      $region12: #{tpu_custom_call.1} parent=5 // pred_fallthru
        _
      %p197 = scmp.lt.s32.totalorder %s27, 56
      // Predicated region
      $region13: #{tpu_custom_call.1} parent=5 // pred_check
        %p198 = pneg %p197
      $region14: #{tpu_custom_call.1} parent=5 // pred_check_branch
        %200 = sbr.rel (%p198) target = $region16
      $region15: #{tpu_custom_call.1} parent=5 // pred_region
        // Predicated region
        $region17: #{tpu_custom_call.1} parent=15 // pred_check
          %p201 = pneg %p92
        $region18: #{tpu_custom_call.1} parent=15 // pred_check_branch
          %203 = sbr.rel (%p201) target = $region20
        $region19: #{tpu_custom_call.1} parent=15 // pred_region
          %s204 = sshra.s32 %s35, 7
          %s205 = sand.u32 %s35, 127
          %s206 = sadd.s32 %s204, %s34
          %s207 = smul.u32 %s206, 128
          %s208 = sshra.s32 %s35, 7
          %s209 = sand.u32 %s35, 127
          %s210 = sadd.s32 %s207, %s209
          %s211 = sld [smem:[#allocation6 + %s210]]
          %s212 = sadd.s32 %s211, %s36
          %s213 = sld [smem:[#allocation7 + %s210]]
          %p214 = scmp.lt.s32.totalorder %s212, %s213
          %s215 = scalar_select %p214, %s212, %s213
          %p216 = scmp.lt.s32.totalorder %s34, 1
          %s217 = scalar_select %p216, %s34, 1
          %p218 = scmp.lt.s32.totalorder %s215, 6
          %s219 = scalar_select %p218, %s215, 6
          %s220 = smul.addr %s217, 7
          %s221 = sadd.s32 %s219, %s220
          %s222 = smul.addr %s221, 4
          %s223 = scalar_lea.vmem %s2, %s222
          %s224 = sshra.s32 %s35, 7
          %s225 = sand.u32 %s35, 127
          %s226 = sadd.s32 %s224, %s34
          %s227 = smul.u32 %s226, 128
          %s228 = sshra.s32 %s35, 7
          %s229 = sand.u32 %s35, 127
          %s230 = sadd.s32 %s227, %s229
          %s231 = sld [smem:[#allocation6 + %s230]]
          %s232 = sadd.s32 %s231, %s36
          %s233 = sld [smem:[#allocation7 + %s230]]
          %p234 = scmp.lt.s32.totalorder %s232, %s233
          %s235 = scalar_select %p234, %s232, %s233
        $region20: #{tpu_custom_call.1} parent=15 // pred_fallthru
          _
        // Predicated region
        $region21: #{tpu_custom_call.1} parent=15 // pred_check
          %p236 = pneg %p120
        $region22: #{tpu_custom_call.1} parent=15 // pred_check_branch
          %238 = sbr.rel (%p236) target = $region24
        $region23: #{tpu_custom_call.1} parent=15 // pred_region
          %s239 = smul.u32 2, %s35
          %p240 = scmp.lt.s32.totalorder %s34, 1
          %s241 = scalar_select %p240, %s34, 1
          %p242 = scmp.lt.s32.totalorder %s239, 7
          %s243 = scalar_select %p242, %s239, 7
          %s244 = smul.addr %s241, 8
          %s245 = sadd.s32 %s243, %s244
          %s246 = smul.addr %s245, 4
          %s247 = scalar_lea.vmem %s3, %s246
          %s248 = smul.u32 2, %s35
        $region24: #{tpu_custom_call.1} parent=15 // pred_fallthru
          _
        // Predicated region
        $region25: #{tpu_custom_call.1} parent=15 // pred_check
          %p249 = pneg %p148
        $region26: #{tpu_custom_call.1} parent=15 // pred_check_branch
          %251 = sbr.rel (%p249) target = $region28
        $region27: #{tpu_custom_call.1} parent=15 // pred_region
          %s252 = smul.u32 2, %s35
          %p253 = scmp.lt.s32.totalorder %s34, 1
          %s254 = scalar_select %p253, %s34, 1
          %p255 = scmp.lt.s32.totalorder %s252, 7
          %s256 = scalar_select %p255, %s252, 7
          %s257 = smul.addr %s254, 8
          %s258 = sadd.s32 %s256, %s257
          %s259 = smul.addr %s258, 4
          %s260 = scalar_lea.vmem %s4, %s259
          %s261 = smul.u32 2, %s35
        $region28: #{tpu_custom_call.1} parent=15 // pred_fallthru
          _
      $region16: #{tpu_custom_call.1} parent=5 // pred_fallthru
        _
      %p262 = scmp.le.s32.totalorder 1, %s27
      %p263 = scmp.lt.s32.totalorder %s27, 57
      %p264 = pnand %p262, %p263
      %p265 = pneg %p264
      // Predicated region
      $region29: #{tpu_custom_call.1} parent=5 // pred_check
        _
      $region30: #{tpu_custom_call.1} parent=5 // pred_check_branch
        %267 = sbr.rel (%p264) target = $region32
      $region31: #{tpu_custom_call.1} parent=5 // pred_region
        %s268 = ssub.s32 %s27, 1
        %s269 = sshra.s32 %s38, 7
        %s270 = sand.u32 %s38, 127
        %s271 = sadd.s32 %s269, %s37
        %s272 = smul.u32 %s271, 128
        %s273 = sshra.s32 %s38, 7
        %s274 = sand.u32 %s38, 127
        %s275 = sadd.s32 %s272, %s274
        %s276 = sld [smem:[#allocation6 + %s275]]
        %s277 = sadd.s32 %s276, %s39
        %s278 = sld [smem:[#allocation7 + %s275]]
        %p279 = scmp.lt.s32.totalorder %s277, %s278
        %s280 = scalar_select %p279, %s277, %s278
        %p281 = scmp.lt.s32.totalorder %s37, 1
        %s282 = scalar_select %p281, %s37, 1
        %p283 = scmp.lt.s32.totalorder %s280, 6
        %s284 = scalar_select %p283, %s280, 6
        %s285 = smul.addr %s282, 7
        %s286 = sadd.s32 %s284, %s285
        %s287 = smul.addr %s286, 4
        %s288 = scalar_lea.vmem %s2, %s287
        %p289 = pneg %p98
        %p290 = pneg %p95
        %s291 = smul.u32 2, %s38
        %p292 = scmp.lt.s32.totalorder %s37, 1
        %s293 = scalar_select %p292, %s37, 1
        %p294 = scmp.lt.s32.totalorder %s291, 7
        %s295 = scalar_select %p294, %s291, 7
        %s296 = smul.addr %s293, 8
        %s297 = sadd.s32 %s295, %s296
        %s298 = smul.addr %s297, 4
        %s299 = scalar_lea.vmem %s3, %s298
        %p300 = pneg %p126
        %p301 = pneg %p123
        %s302 = smul.u32 2, %s38
        %p303 = scmp.lt.s32.totalorder %s37, 1
        %s304 = scalar_select %p303, %s37, 1
        %p305 = scmp.lt.s32.totalorder %s302, 7
        %s306 = scalar_select %p305, %s302, 7
        %s307 = smul.addr %s304, 8
        %s308 = sadd.s32 %s306, %s307
        %s309 = smul.addr %s308, 4
        %s310 = scalar_lea.vmem %s4, %s309
        %p311 = pneg %p154
        %p312 = pneg %p151
        %p313 = pneg %p182
        %p314 = pneg %p179
        %s315 = sand.u32 %s169, 1
        %s316 = scalar_lea.sflag [#allocation9], %s315
        %s317 = sand.u32 %s169, 1
        %s318 = smul.addr %s317, 8
        %s319 = scalar_lea.vmem [#allocation8], %s318
        %s320 = sshra.s32 %s38, 7
        %s321 = sand.u32 %s38, 127
        %s322 = sadd.s32 %s320, %s37
        %s323 = smul.u32 %s322, 128
        %s324 = sshra.s32 %s38, 7
        %s325 = sand.u32 %s38, 127
        %s326 = sadd.s32 %s323, %s325
        %s327 = sld [smem:[#allocation6 + %s326]]
        %s328 = sadd.s32 %s327, %s39
        %s329 = sld [smem:[#allocation7 + %s326]]
        %p330 = scmp.lt.s32.totalorder %s328, %s329
        %s331 = scalar_select %p330, %s328, %s329
        %p332 = scmp.lt.s32.totalorder %s37, 1
        %s333 = scalar_select %p332, %s37, 1
        %p334 = scmp.lt.s32.totalorder %s331, 6
        %s335 = scalar_select %p334, %s331, 6
        %s336 = smul.addr %s333, 7
        %s337 = sadd.s32 %s335, %s336
        %s338 = smul.addr %s337, 4
        %s339 = scalar_lea.vmem %s2, %s338
        %s340 = sshra.s32 %s38, 7
        %s341 = sand.u32 %s38, 127
        %s342 = sadd.s32 %s340, %s37
        %s343 = smul.u32 %s342, 128
        %s344 = sshra.s32 %s38, 7
        %s345 = sand.u32 %s38, 127
        %s346 = sadd.s32 %s343, %s345
        %s347 = sld [smem:[#allocation6 + %s346]]
        %s348 = sadd.s32 %s347, %s39
        %s349 = sld [smem:[#allocation7 + %s346]]
        %p350 = scmp.lt.s32.totalorder %s348, %s349
        %s351 = scalar_select %p350, %s348, %s349
        %s352 = smul.u32 2, %s38
        %p353 = scmp.lt.s32.totalorder %s37, 1
        %s354 = scalar_select %p353, %s37, 1
        %p355 = scmp.lt.s32.totalorder %s352, 7
        %s356 = scalar_select %p355, %s352, 7
        %s357 = smul.addr %s354, 8
        %s358 = sadd.s32 %s356, %s357
        %s359 = smul.addr %s358, 4
        %s360 = scalar_lea.vmem %s3, %s359
        %s361 = smul.u32 2, %s38
        %s362 = smul.u32 2, %s38
        %p363 = scmp.lt.s32.totalorder %s37, 1
        %s364 = scalar_select %p363, %s37, 1
        %p365 = scmp.lt.s32.totalorder %s362, 7
        %s366 = scalar_select %p365, %s362, 7
        %s367 = smul.addr %s364, 8
        %s368 = sadd.s32 %s366, %s367
        %s369 = smul.addr %s368, 4
        %s370 = scalar_lea.vmem %s4, %s369
        %s371 = smul.u32 2, %s38
        %s372 = smul.u32 2, %s38
        %p373 = scmp.eq.s32.totalorder %s39, 0
        // Predicated region
        $region33: #{tpu_custom_call.1} parent=31 // pred_check
          %p374 = pneg %p373
        $region34: #{tpu_custom_call.1} parent=31 // pred_check_branch
          %376 = sbr.rel (%p374) target = $region36
        $region35: #{tpu_custom_call.1} parent=31 // pred_region
          %377 = vst [vmem:[#allocation2] sm:$0xff] 0.0
          %v378 = vld [vmem:[%s360] sm:$0x77]
          %v379 = vld [vmem:[%s370] sm:$0x77]
          %v380 = vadd.f32 %v378, %v379
          %v381 = vadd.f32 %v380, 1.0
          %v382 = vmul.f32 %v381, 6.5
          %v383 = vmax.f32 %v382, 0.0
          %v384 = vmin.f32 %v383, 13.0
          %v385 = vmul.f32 %v381, 4.5
          %v386 = vmax.f32 %v385, 0.0
          %v387 = vmin.f32 %v386, 9.0
          %v388 = vmul.f32 %v381, 2.5
          %v389 = vmax.f32 %v388, 0.0
          %v390 = vmin.f32 %v389, 5.0
          %v391 = vfloor.f32 %v384
          %v392 = vfloor.f32 %v387
          %v393 = vfloor.f32 %v390
          %v394 = vsub.f32 %v384, %v391
          %v395 = vsub.f32 %v387, %v392
          %v396 = vsub.f32 %v390, %v393
          %v397 = vcvt.f32.s32.to.zero.pseudo %v391
          %v398 = vcvt.f32.s32.to.zero.pseudo %v392
          %v399 = vcvt.f32.s32.to.zero.pseudo %v393
          %v400 = vadd.s32 %v397, 1
          %vm401 = vcmp.lt.s32.totalorder %v400, 13
          %v402 = vsel %vm401, %v400, 13
          %v403 = vadd.s32 %v398, 1
          %vm404 = vcmp.lt.s32.totalorder %v403, 9
          %v405 = vsel %vm404, %v403, 9
          %v406 = vadd.s32 %v399, 1
          %vm407 = vcmp.lt.s32.totalorder %v406, 5
          %v408 = vsel %vm407, %v406, 5
          %v409 = vsub.f32 1.0, %v394
          %v410 = vsub.f32 1.0, %v395
          %v411 = vsub.f32 1.0, %v396
          %v412 = vmul.u32 %v399, 140
          %v413 = vmul.u32 %v398, 14
          %v414 = vrot.slane %v413, 7
          %v415 = vadd.s32 %v412, %v414
          %v416 = vrot.slane %v397, 6
          %v417 = vadd.s32 %v415, %v416
          %v419 = vrot.slane %v410, 7
          %v421 = vmul.f32 %v411, %v419
          %v423 = vrot.slane %v409, 6
          %v425 = vmul.f32 %v421, %v423
          %v426 = vrot.slane %v402, 6
          %v427 = vadd.s32 %v415, %v426
          %v429 = vrot.slane %v394, 6
          %v431 = vmul.f32 %v421, %v429
          %v432 = vmul.u32 %v405, 14
          %v433 = vrot.slane %v432, 7
          %v434 = vadd.s32 %v412, %v433
          %v435 = vadd.s32 %v434, %v416
          %v437 = vrot.slane %v395, 7
          %v439 = vmul.f32 %v411, %v437
          %v440 = vmul.f32 %v439, %v423
          %v441 = vadd.s32 %v434, %v426
          %v442 = vmul.f32 %v439, %v429
          %v443 = vmul.u32 %v408, 140
          %v444 = vadd.s32 %v443, %v414
          %v445 = vadd.s32 %v444, %v416
          %v446 = vmul.f32 %v396, %v419
          %v447 = vmul.f32 %v446, %v423
          %v448 = vadd.s32 %v444, %v426
          %v449 = vmul.f32 %v446, %v429
          %v450 = vadd.s32 %v443, %v433
          %v451 = vadd.s32 %v450, %v416
          %v452 = vmul.f32 %v396, %v437
          %v453 = vmul.f32 %v452, %v423
          %v454 = vadd.s32 %v450, %v426
          %v455 = vmul.f32 %v452, %v429
          %v456 = vperm.slane %v417, 2
          %v457 = vperm.slane %v417, 6
          %v458 = vperm.slane %v427, 2
          %v459 = vperm.slane %v427, 6
          %v460 = vperm.slane %v435, 2
          %v461 = vperm.slane %v435, 6
          %v462 = vperm.slane %v441, 2
          %v463 = vperm.slane %v441, 6
          %v464 = vperm.slane %v445, 2
          %v465 = vperm.slane %v445, 6
          %v466 = vperm.slane %v448, 2
          %v467 = vperm.slane %v448, 6
          %v468 = vperm.slane %v451, 2
          %v469 = vperm.slane %v451, 6
          %v470 = vperm.slane %v454, 2
          %v471 = vperm.slane %v454, 6
          %vm472 = vcmask 1040384
          %v473 = vsel %vm472, %v456, %v458
          %v474 = vsel %vm472, %v457, %v459
          %vm475 = vcmask 1041408
          %v476 = vsel %vm475, %v473, %v460
          %v477 = vsel %vm475, %v474, %v461
          %vm478 = vcmask 1042432
          %v479 = vsel %vm478, %v476, %v462
          %v480 = vsel %vm478, %v477, %v463
          %vm481 = vcmask 1043456
          %v482 = vsel %vm481, %v479, %v464
          %v483 = vsel %vm481, %v480, %v465
          %vm484 = vcmask 1044480
          %v485 = vsel %vm484, %v482, %v466
          %v486 = vsel %vm484, %v483, %v467
          %vm487 = vcmask 1045504
          %v488 = vsel %vm487, %v485, %v468
          %v489 = vsel %vm487, %v486, %v469
          %vm490 = vcmask 1046528
          %v491 = vsel %vm490, %v488, %v470
          %v492 = vsel %vm490, %v489, %v471
          %493 = vst [vmem:[#allocation3] sm:$0xff] %v491
          %494 = vst [vmem:[#allocation3 + $0x8] sm:$0xff] %v492
          %v496 = vperm.slane %v425, 2
          %v497 = vperm.slane %v425, 6
          %v501 = vperm.slane %v431, 2
          %v502 = vperm.slane %v431, 6
          %v506 = vperm.slane %v440, 2
          %v507 = vperm.slane %v440, 6
          %v511 = vperm.slane %v442, 2
          %v512 = vperm.slane %v442, 6
          %v516 = vperm.slane %v447, 2
          %v517 = vperm.slane %v447, 6
          %v521 = vperm.slane %v449, 2
          %v522 = vperm.slane %v449, 6
          %v526 = vperm.slane %v453, 2
          %v527 = vperm.slane %v453, 6
          %v531 = vperm.slane %v455, 2
          %v532 = vperm.slane %v455, 6
          %v535 = vsel %vm472, %v496, %v501
          %v536 = vsel %vm472, %v497, %v502
          %v537 = vsel %vm475, %v535, %v506
          %v538 = vsel %vm475, %v536, %v507
          %v539 = vsel %vm478, %v537, %v511
          %v540 = vsel %vm478, %v538, %v512
          %v541 = vsel %vm481, %v539, %v516
          %v542 = vsel %vm481, %v540, %v517
          %v543 = vsel %vm484, %v541, %v521
          %v544 = vsel %vm484, %v542, %v522
          %v545 = vsel %vm487, %v543, %v526
          %v546 = vsel %vm487, %v544, %v527
          %v547 = vsel %vm490, %v545, %v531
          %v548 = vsel %vm490, %v546, %v532
          %549 = vst [vmem:[#allocation4] sm:$0xff] %v547
          %550 = vst [vmem:[#allocation4 + $0x8] sm:$0xff] %v548
        $region36: #{tpu_custom_call.1} parent=31 // pred_fallthru
          _
        %s551 = sshra.s32 %s38, 7
        %s552 = sand.u32 %s38, 127
        %s553 = sadd.s32 %s551, %s37
        %s554 = smul.u32 %s553, 128
        %s555 = sshra.s32 %s38, 7
        %s556 = sand.u32 %s38, 127
        %s557 = sadd.s32 %s554, %s556
        %s558 = sld [smem:[#allocation6 + %s557]]
        %s559 = sadd.s32 %s558, %s39
        %s560 = sld [smem:[#allocation7 + %s557]]
        %p561 = scmp.le.s32.totalorder %s559, %s560
        // Predicated region
        $region37: #{tpu_custom_call.1} parent=31 // pred_check
          %p562 = pneg %p561
        $region38: #{tpu_custom_call.1} parent=31 // pred_check_branch
          %564 = sbr.rel (%p562) target = $region40
        $region39: #{tpu_custom_call.1} parent=31 // pred_region
          %s565 = smul.u32 %s559, 128
          %v566 = vlaneseq
          %v567 = vshrl.u32 %v566, 7
          %v568 = vadd.s32 %v567, 8
          %v569 = vadd.s32 %v567, 16
          %v570 = vadd.s32 %v567, 24
          %v571 = vadd.s32 %v567, 32
          %v572 = vadd.s32 %v567, 40
          %v573 = vadd.s32 %v567, 48
          %v574 = vadd.s32 %v567, 56
          %v575 = vadd.s32 %v567, 64
          %v576 = vadd.s32 %v567, 72
          %v577 = vadd.s32 %v567, 80
          %v578 = vadd.s32 %v567, 88
          %v579 = vadd.s32 %v567, 96
          %v580 = vadd.s32 %v567, 104
          %v581 = vadd.s32 %v567, 112
          %v582 = vadd.s32 %v567, 120
          %v583 = vld [vmem:[#allocation3] ss:$8 sm:$0x3]
          %v584 = vstv %s565
          %v585 = vsub.s32 %v583, %v584
          %v586 = vperm.slane %v585, 0
          %v587 = vperm.slane %v585, 1
          %vm588 = vcmp.eq.s32.totalorder %v567, %v586
          %vm589 = vcmp.eq.s32.totalorder %v567, %v587
          %vm590 = vcmp.eq.s32.totalorder %v568, %v586
          %vm591 = vcmp.eq.s32.totalorder %v568, %v587
          %vm592 = vcmp.eq.s32.totalorder %v569, %v586
          %vm593 = vcmp.eq.s32.totalorder %v569, %v587
          %vm594 = vcmp.eq.s32.totalorder %v570, %v586
          %vm595 = vcmp.eq.s32.totalorder %v570, %v587
          %vm596 = vcmp.eq.s32.totalorder %v571, %v586
          %vm597 = vcmp.eq.s32.totalorder %v571, %v587
          %vm598 = vcmp.eq.s32.totalorder %v572, %v586
          %vm599 = vcmp.eq.s32.totalorder %v572, %v587
          %vm600 = vcmp.eq.s32.totalorder %v573, %v586
          %vm601 = vcmp.eq.s32.totalorder %v573, %v587
          %vm602 = vcmp.eq.s32.totalorder %v574, %v586
          %vm603 = vcmp.eq.s32.totalorder %v574, %v587
          %vm604 = vcmp.eq.s32.totalorder %v575, %v586
          %vm605 = vcmp.eq.s32.totalorder %v575, %v587
          %vm606 = vcmp.eq.s32.totalorder %v576, %v586
          %vm607 = vcmp.eq.s32.totalorder %v576, %v587
          %vm608 = vcmp.eq.s32.totalorder %v577, %v586
          %vm609 = vcmp.eq.s32.totalorder %v577, %v587
          %vm610 = vcmp.eq.s32.totalorder %v578, %v586
          %vm611 = vcmp.eq.s32.totalorder %v578, %v587
          %vm612 = vcmp.eq.s32.totalorder %v579, %v586
          %vm613 = vcmp.eq.s32.totalorder %v579, %v587
          %vm614 = vcmp.eq.s32.totalorder %v580, %v586
          %vm615 = vcmp.eq.s32.totalorder %v580, %v587
          %vm616 = vcmp.eq.s32.totalorder %v581, %v586
          %vm617 = vcmp.eq.s32.totalorder %v581, %v587
          %vm618 = vcmp.eq.s32.totalorder %v582, %v586
          %vm619 = vcmp.eq.s32.totalorder %v582, %v587
          %v620 = vld [vmem:[#allocation4] ss:$8 sm:$0x3]
          %v622 = vperm.slane %v620, 0
          %v623 = vperm.slane %v620, 1
          %v626 = vsel %vm588, %v622, 0.0
          %v627 = vsel %vm589, %v623, 0.0
          %v628 = vsel %vm590, %v622, 0.0
          %v629 = vsel %vm591, %v623, 0.0
          %v630 = vsel %vm592, %v622, 0.0
          %v631 = vsel %vm593, %v623, 0.0
          %v632 = vsel %vm594, %v622, 0.0
          %v633 = vsel %vm595, %v623, 0.0
          %v634 = vsel %vm596, %v622, 0.0
          %v635 = vsel %vm597, %v623, 0.0
          %v636 = vsel %vm598, %v622, 0.0
          %v637 = vsel %vm599, %v623, 0.0
          %v638 = vsel %vm600, %v622, 0.0
          %v639 = vsel %vm601, %v623, 0.0
          %v640 = vsel %vm602, %v622, 0.0
          %v641 = vsel %vm603, %v623, 0.0
          %v642 = vsel %vm604, %v622, 0.0
          %v643 = vsel %vm605, %v623, 0.0
          %v644 = vsel %vm606, %v622, 0.0
          %v645 = vsel %vm607, %v623, 0.0
          %v646 = vsel %vm608, %v622, 0.0
          %v647 = vsel %vm609, %v623, 0.0
          %v648 = vsel %vm610, %v622, 0.0
          %v649 = vsel %vm611, %v623, 0.0
          %v650 = vsel %vm612, %v622, 0.0
          %v651 = vsel %vm613, %v623, 0.0
          %v652 = vsel %vm614, %v622, 0.0
          %v653 = vsel %vm615, %v623, 0.0
          %v654 = vsel %vm616, %v622, 0.0
          %v655 = vsel %vm617, %v623, 0.0
          %v656 = vsel %vm618, %v622, 0.0
          %v657 = vsel %vm619, %v623, 0.0
          %s658 = scalar_lea.vmem [#allocation3], 1
          %v659 = vld [vmem:[%s658] ss:$8 sm:$0x3]
          %v660 = vsub.s32 %v659, %v584
          %v661 = vperm.slane %v660, 0
          %v662 = vperm.slane %v660, 1
          %vm663 = vcmp.eq.s32.totalorder %v567, %v661
          %vm664 = vcmp.eq.s32.totalorder %v567, %v662
          %vm665 = vcmp.eq.s32.totalorder %v568, %v661
          %vm666 = vcmp.eq.s32.totalorder %v568, %v662
          %vm667 = vcmp.eq.s32.totalorder %v569, %v661
          %vm668 = vcmp.eq.s32.totalorder %v569, %v662
          %vm669 = vcmp.eq.s32.totalorder %v570, %v661
          %vm670 = vcmp.eq.s32.totalorder %v570, %v662
          %vm671 = vcmp.eq.s32.totalorder %v571, %v661
          %vm672 = vcmp.eq.s32.totalorder %v571, %v662
          %vm673 = vcmp.eq.s32.totalorder %v572, %v661
          %vm674 = vcmp.eq.s32.totalorder %v572, %v662
          %vm675 = vcmp.eq.s32.totalorder %v573, %v661
          %vm676 = vcmp.eq.s32.totalorder %v573, %v662
          %vm677 = vcmp.eq.s32.totalorder %v574, %v661
          %vm678 = vcmp.eq.s32.totalorder %v574, %v662
          %vm679 = vcmp.eq.s32.totalorder %v575, %v661
          %vm680 = vcmp.eq.s32.totalorder %v575, %v662
          %vm681 = vcmp.eq.s32.totalorder %v576, %v661
          %vm682 = vcmp.eq.s32.totalorder %v576, %v662
          %vm683 = vcmp.eq.s32.totalorder %v577, %v661
          %vm684 = vcmp.eq.s32.totalorder %v577, %v662
          %vm685 = vcmp.eq.s32.totalorder %v578, %v661
          %vm686 = vcmp.eq.s32.totalorder %v578, %v662
          %vm687 = vcmp.eq.s32.totalorder %v579, %v661
          %vm688 = vcmp.eq.s32.totalorder %v579, %v662
          %vm689 = vcmp.eq.s32.totalorder %v580, %v661
          %vm690 = vcmp.eq.s32.totalorder %v580, %v662
          %vm691 = vcmp.eq.s32.totalorder %v581, %v661
          %vm692 = vcmp.eq.s32.totalorder %v581, %v662
          %vm693 = vcmp.eq.s32.totalorder %v582, %v661
          %vm694 = vcmp.eq.s32.totalorder %v582, %v662
          %s695 = scalar_lea.vmem [#allocation4], 1
          %v696 = vld [vmem:[%s695] ss:$8 sm:$0x3]
          %v698 = vperm.slane %v696, 0
          %v699 = vperm.slane %v696, 1
          %v702 = vsel %vm663, %v698, 0.0
          %v703 = vsel %vm664, %v699, 0.0
          %v704 = vsel %vm665, %v698, 0.0
          %v705 = vsel %vm666, %v699, 0.0
          %v706 = vsel %vm667, %v698, 0.0
          %v707 = vsel %vm668, %v699, 0.0
          %v708 = vsel %vm669, %v698, 0.0
          %v709 = vsel %vm670, %v699, 0.0
          %v710 = vsel %vm671, %v698, 0.0
          %v711 = vsel %vm672, %v699, 0.0
          %v712 = vsel %vm673, %v698, 0.0
          %v713 = vsel %vm674, %v699, 0.0
          %v714 = vsel %vm675, %v698, 0.0
          %v715 = vsel %vm676, %v699, 0.0
          %v716 = vsel %vm677, %v698, 0.0
          %v717 = vsel %vm678, %v699, 0.0
          %v718 = vsel %vm679, %v698, 0.0
          %v719 = vsel %vm680, %v699, 0.0
          %v720 = vsel %vm681, %v698, 0.0
          %v721 = vsel %vm682, %v699, 0.0
          %v722 = vsel %vm683, %v698, 0.0
          %v723 = vsel %vm684, %v699, 0.0
          %v724 = vsel %vm685, %v698, 0.0
          %v725 = vsel %vm686, %v699, 0.0
          %v726 = vsel %vm687, %v698, 0.0
          %v727 = vsel %vm688, %v699, 0.0
          %v728 = vsel %vm689, %v698, 0.0
          %v729 = vsel %vm690, %v699, 0.0
          %v730 = vsel %vm691, %v698, 0.0
          %v731 = vsel %vm692, %v699, 0.0
          %v732 = vsel %vm693, %v698, 0.0
          %v733 = vsel %vm694, %v699, 0.0
          %v734 = vadd.f32 %v626, %v702
          %v735 = vadd.f32 %v627, %v703
          %v736 = vadd.f32 %v628, %v704
          %v737 = vadd.f32 %v629, %v705
          %v738 = vadd.f32 %v630, %v706
          %v739 = vadd.f32 %v631, %v707
          %v740 = vadd.f32 %v632, %v708
          %v741 = vadd.f32 %v633, %v709
          %v742 = vadd.f32 %v634, %v710
          %v743 = vadd.f32 %v635, %v711
          %v744 = vadd.f32 %v636, %v712
          %v745 = vadd.f32 %v637, %v713
          %v746 = vadd.f32 %v638, %v714
          %v747 = vadd.f32 %v639, %v715
          %v748 = vadd.f32 %v640, %v716
          %v749 = vadd.f32 %v641, %v717
          %v750 = vadd.f32 %v642, %v718
          %v751 = vadd.f32 %v643, %v719
          %v752 = vadd.f32 %v644, %v720
          %v753 = vadd.f32 %v645, %v721
          %v754 = vadd.f32 %v646, %v722
          %v755 = vadd.f32 %v647, %v723
          %v756 = vadd.f32 %v648, %v724
          %v757 = vadd.f32 %v649, %v725
          %v758 = vadd.f32 %v650, %v726
          %v759 = vadd.f32 %v651, %v727
          %v760 = vadd.f32 %v652, %v728
          %v761 = vadd.f32 %v653, %v729
          %v762 = vadd.f32 %v654, %v730
          %v763 = vadd.f32 %v655, %v731
          %v764 = vadd.f32 %v656, %v732
          %v765 = vadd.f32 %v657, %v733
          %s766 = scalar_lea.vmem [#allocation3], 2
          %v767 = vld [vmem:[%s766] ss:$8 sm:$0x3]
          %v768 = vsub.s32 %v767, %v584
          %v769 = vperm.slane %v768, 0
          %v770 = vperm.slane %v768, 1
          %vm771 = vcmp.eq.s32.totalorder %v567, %v769
          %vm772 = vcmp.eq.s32.totalorder %v567, %v770
          %vm773 = vcmp.eq.s32.totalorder %v568, %v769
          %vm774 = vcmp.eq.s32.totalorder %v568, %v770
          %vm775 = vcmp.eq.s32.totalorder %v569, %v769
          %vm776 = vcmp.eq.s32.totalorder %v569, %v770
          %vm777 = vcmp.eq.s32.totalorder %v570, %v769
          %vm778 = vcmp.eq.s32.totalorder %v570, %v770
          %vm779 = vcmp.eq.s32.totalorder %v571, %v769
          %vm780 = vcmp.eq.s32.totalorder %v571, %v770
          %vm781 = vcmp.eq.s32.totalorder %v572, %v769
          %vm782 = vcmp.eq.s32.totalorder %v572, %v770
          %vm783 = vcmp.eq.s32.totalorder %v573, %v769
          %vm784 = vcmp.eq.s32.totalorder %v573, %v770
          %vm785 = vcmp.eq.s32.totalorder %v574, %v769
          %vm786 = vcmp.eq.s32.totalorder %v574, %v770
          %vm787 = vcmp.eq.s32.totalorder %v575, %v769
          %vm788 = vcmp.eq.s32.totalorder %v575, %v770
          %vm789 = vcmp.eq.s32.totalorder %v576, %v769
          %vm790 = vcmp.eq.s32.totalorder %v576, %v770
          %vm791 = vcmp.eq.s32.totalorder %v577, %v769
          %vm792 = vcmp.eq.s32.totalorder %v577, %v770
          %vm793 = vcmp.eq.s32.totalorder %v578, %v769
          %vm794 = vcmp.eq.s32.totalorder %v578, %v770
          %vm795 = vcmp.eq.s32.totalorder %v579, %v769
          %vm796 = vcmp.eq.s32.totalorder %v579, %v770
          %vm797 = vcmp.eq.s32.totalorder %v580, %v769
          %vm798 = vcmp.eq.s32.totalorder %v580, %v770
          %vm799 = vcmp.eq.s32.totalorder %v581, %v769
          %vm800 = vcmp.eq.s32.totalorder %v581, %v770
          %vm801 = vcmp.eq.s32.totalorder %v582, %v769
          %vm802 = vcmp.eq.s32.totalorder %v582, %v770
          %s803 = scalar_lea.vmem [#allocation4], 2
          %v804 = vld [vmem:[%s803] ss:$8 sm:$0x3]
          %v806 = vperm.slane %v804, 0
          %v807 = vperm.slane %v804, 1
          %v810 = vsel %vm771, %v806, 0.0
          %v811 = vsel %vm772, %v807, 0.0
          %v812 = vsel %vm773, %v806, 0.0
          %v813 = vsel %vm774, %v807, 0.0
          %v814 = vsel %vm775, %v806, 0.0
          %v815 = vsel %vm776, %v807, 0.0
          %v816 = vsel %vm777, %v806, 0.0
          %v817 = vsel %vm778, %v807, 0.0
          %v818 = vsel %vm779, %v806, 0.0
          %v819 = vsel %vm780, %v807, 0.0
          %v820 = vsel %vm781, %v806, 0.0
          %v821 = vsel %vm782, %v807, 0.0
          %v822 = vsel %vm783, %v806, 0.0
          %v823 = vsel %vm784, %v807, 0.0
          %v824 = vsel %vm785, %v806, 0.0
          %v825 = vsel %vm786, %v807, 0.0
          %v826 = vsel %vm787, %v806, 0.0
          %v827 = vsel %vm788, %v807, 0.0
          %v828 = vsel %vm789, %v806, 0.0
          %v829 = vsel %vm790, %v807, 0.0
          %v830 = vsel %vm791, %v806, 0.0
          %v831 = vsel %vm792, %v807, 0.0
          %v832 = vsel %vm793, %v806, 0.0
          %v833 = vsel %vm794, %v807, 0.0
          %v834 = vsel %vm795, %v806, 0.0
          %v835 = vsel %vm796, %v807, 0.0
          %v836 = vsel %vm797, %v806, 0.0
          %v837 = vsel %vm798, %v807, 0.0
          %v838 = vsel %vm799, %v806, 0.0
          %v839 = vsel %vm800, %v807, 0.0
          %v840 = vsel %vm801, %v806, 0.0
          %v841 = vsel %vm802, %v807, 0.0
          %v842 = vadd.f32 %v734, %v810
          %v843 = vadd.f32 %v735, %v811
          %v844 = vadd.f32 %v736, %v812
          %v845 = vadd.f32 %v737, %v813
          %v846 = vadd.f32 %v738, %v814
          %v847 = vadd.f32 %v739, %v815
          %v848 = vadd.f32 %v740, %v816
          %v849 = vadd.f32 %v741, %v817
          %v850 = vadd.f32 %v742, %v818
          %v851 = vadd.f32 %v743, %v819
          %v852 = vadd.f32 %v744, %v820
          %v853 = vadd.f32 %v745, %v821
          %v854 = vadd.f32 %v746, %v822
          %v855 = vadd.f32 %v747, %v823
          %v856 = vadd.f32 %v748, %v824
          %v857 = vadd.f32 %v749, %v825
          %v858 = vadd.f32 %v750, %v826
          %v859 = vadd.f32 %v751, %v827
          %v860 = vadd.f32 %v752, %v828
          %v861 = vadd.f32 %v753, %v829
          %v862 = vadd.f32 %v754, %v830
          %v863 = vadd.f32 %v755, %v831
          %v864 = vadd.f32 %v756, %v832
          %v865 = vadd.f32 %v757, %v833
          %v866 = vadd.f32 %v758, %v834
          %v867 = vadd.f32 %v759, %v835
          %v868 = vadd.f32 %v760, %v836
          %v869 = vadd.f32 %v761, %v837
          %v870 = vadd.f32 %v762, %v838
          %v871 = vadd.f32 %v763, %v839
          %v872 = vadd.f32 %v764, %v840
          %v873 = vadd.f32 %v765, %v841
          %s874 = scalar_lea.vmem [#allocation3], 3
          %v875 = vld [vmem:[%s874] ss:$8 sm:$0x3]
          %v876 = vsub.s32 %v875, %v584
          %v877 = vperm.slane %v876, 0
          %v878 = vperm.slane %v876, 1
          %vm879 = vcmp.eq.s32.totalorder %v567, %v877
          %vm880 = vcmp.eq.s32.totalorder %v567, %v878
          %vm881 = vcmp.eq.s32.totalorder %v568, %v877
          %vm882 = vcmp.eq.s32.totalorder %v568, %v878
          %vm883 = vcmp.eq.s32.totalorder %v569, %v877
          %vm884 = vcmp.eq.s32.totalorder %v569, %v878
          %vm885 = vcmp.eq.s32.totalorder %v570, %v877
          %vm886 = vcmp.eq.s32.totalorder %v570, %v878
          %vm887 = vcmp.eq.s32.totalorder %v571, %v877
          %vm888 = vcmp.eq.s32.totalorder %v571, %v878
          %vm889 = vcmp.eq.s32.totalorder %v572, %v877
          %vm890 = vcmp.eq.s32.totalorder %v572, %v878
          %vm891 = vcmp.eq.s32.totalorder %v573, %v877
          %vm892 = vcmp.eq.s32.totalorder %v573, %v878
          %vm893 = vcmp.eq.s32.totalorder %v574, %v877
          %vm894 = vcmp.eq.s32.totalorder %v574, %v878
          %vm895 = vcmp.eq.s32.totalorder %v575, %v877
          %vm896 = vcmp.eq.s32.totalorder %v575, %v878
          %vm897 = vcmp.eq.s32.totalorder %v576, %v877
          %vm898 = vcmp.eq.s32.totalorder %v576, %v878
          %vm899 = vcmp.eq.s32.totalorder %v577, %v877
          %vm900 = vcmp.eq.s32.totalorder %v577, %v878
          %vm901 = vcmp.eq.s32.totalorder %v578, %v877
          %vm902 = vcmp.eq.s32.totalorder %v578, %v878
          %vm903 = vcmp.eq.s32.totalorder %v579, %v877
          %vm904 = vcmp.eq.s32.totalorder %v579, %v878
          %vm905 = vcmp.eq.s32.totalorder %v580, %v877
          %vm906 = vcmp.eq.s32.totalorder %v580, %v878
          %vm907 = vcmp.eq.s32.totalorder %v581, %v877
          %vm908 = vcmp.eq.s32.totalorder %v581, %v878
          %vm909 = vcmp.eq.s32.totalorder %v582, %v877
          %vm910 = vcmp.eq.s32.totalorder %v582, %v878
          %s911 = scalar_lea.vmem [#allocation4], 3
          %v912 = vld [vmem:[%s911] ss:$8 sm:$0x3]
          %v914 = vperm.slane %v912, 0
          %v915 = vperm.slane %v912, 1
          %v918 = vsel %vm879, %v914, 0.0
          %v919 = vsel %vm880, %v915, 0.0
          %v920 = vsel %vm881, %v914, 0.0
          %v921 = vsel %vm882, %v915, 0.0
          %v922 = vsel %vm883, %v914, 0.0
          %v923 = vsel %vm884, %v915, 0.0
          %v924 = vsel %vm885, %v914, 0.0
          %v925 = vsel %vm886, %v915, 0.0
          %v926 = vsel %vm887, %v914, 0.0
          %v927 = vsel %vm888, %v915, 0.0
          %v928 = vsel %vm889, %v914, 0.0
          %v929 = vsel %vm890, %v915, 0.0
          %v930 = vsel %vm891, %v914, 0.0
          %v931 = vsel %vm892, %v915, 0.0
          %v932 = vsel %vm893, %v914, 0.0
          %v933 = vsel %vm894, %v915, 0.0
          %v934 = vsel %vm895, %v914, 0.0
          %v935 = vsel %vm896, %v915, 0.0
          %v936 = vsel %vm897, %v914, 0.0
          %v937 = vsel %vm898, %v915, 0.0
          %v938 = vsel %vm899, %v914, 0.0
          %v939 = vsel %vm900, %v915, 0.0
          %v940 = vsel %vm901, %v914, 0.0
          %v941 = vsel %vm902, %v915, 0.0
          %v942 = vsel %vm903, %v914, 0.0
          %v943 = vsel %vm904, %v915, 0.0
          %v944 = vsel %vm905, %v914, 0.0
          %v945 = vsel %vm906, %v915, 0.0
          %v946 = vsel %vm907, %v914, 0.0
          %v947 = vsel %vm908, %v915, 0.0
          %v948 = vsel %vm909, %v914, 0.0
          %v949 = vsel %vm910, %v915, 0.0
          %v950 = vadd.f32 %v842, %v918
          %v951 = vadd.f32 %v843, %v919
          %v952 = vadd.f32 %v844, %v920
          %v953 = vadd.f32 %v845, %v921
          %v954 = vadd.f32 %v846, %v922
          %v955 = vadd.f32 %v847, %v923
          %v956 = vadd.f32 %v848, %v924
          %v957 = vadd.f32 %v849, %v925
          %v958 = vadd.f32 %v850, %v926
          %v959 = vadd.f32 %v851, %v927
          %v960 = vadd.f32 %v852, %v928
          %v961 = vadd.f32 %v853, %v929
          %v962 = vadd.f32 %v854, %v930
          %v963 = vadd.f32 %v855, %v931
          %v964 = vadd.f32 %v856, %v932
          %v965 = vadd.f32 %v857, %v933
          %v966 = vadd.f32 %v858, %v934
          %v967 = vadd.f32 %v859, %v935
          %v968 = vadd.f32 %v860, %v936
          %v969 = vadd.f32 %v861, %v937
          %v970 = vadd.f32 %v862, %v938
          %v971 = vadd.f32 %v863, %v939
          %v972 = vadd.f32 %v864, %v940
          %v973 = vadd.f32 %v865, %v941
          %v974 = vadd.f32 %v866, %v942
          %v975 = vadd.f32 %v867, %v943
          %v976 = vadd.f32 %v868, %v944
          %v977 = vadd.f32 %v869, %v945
          %v978 = vadd.f32 %v870, %v946
          %v979 = vadd.f32 %v871, %v947
          %v980 = vadd.f32 %v872, %v948
          %v981 = vadd.f32 %v873, %v949
          %s982 = scalar_lea.vmem [#allocation3], 4
          %v983 = vld [vmem:[%s982] ss:$8 sm:$0x3]
          %v984 = vsub.s32 %v983, %v584
          %v985 = vperm.slane %v984, 0
          %v986 = vperm.slane %v984, 1
          %vm987 = vcmp.eq.s32.totalorder %v567, %v985
          %vm988 = vcmp.eq.s32.totalorder %v567, %v986
          %vm989 = vcmp.eq.s32.totalorder %v568, %v985
          %vm990 = vcmp.eq.s32.totalorder %v568, %v986
          %vm991 = vcmp.eq.s32.totalorder %v569, %v985
          %vm992 = vcmp.eq.s32.totalorder %v569, %v986
          %vm993 = vcmp.eq.s32.totalorder %v570, %v985
          %vm994 = vcmp.eq.s32.totalorder %v570, %v986
          %vm995 = vcmp.eq.s32.totalorder %v571, %v985
          %vm996 = vcmp.eq.s32.totalorder %v571, %v986
          %vm997 = vcmp.eq.s32.totalorder %v572, %v985
          %vm998 = vcmp.eq.s32.totalorder %v572, %v986
          %vm999 = vcmp.eq.s32.totalorder %v573, %v985
          %vm1000 = vcmp.eq.s32.totalorder %v573, %v986
          %vm1001 = vcmp.eq.s32.totalorder %v574, %v985
          %vm1002 = vcmp.eq.s32.totalorder %v574, %v986
          %vm1003 = vcmp.eq.s32.totalorder %v575, %v985
          %vm1004 = vcmp.eq.s32.totalorder %v575, %v986
          %vm1005 = vcmp.eq.s32.totalorder %v576, %v985
          %vm1006 = vcmp.eq.s32.totalorder %v576, %v986
          %vm1007 = vcmp.eq.s32.totalorder %v577, %v985
          %vm1008 = vcmp.eq.s32.totalorder %v577, %v986
          %vm1009 = vcmp.eq.s32.totalorder %v578, %v985
          %vm1010 = vcmp.eq.s32.totalorder %v578, %v986
          %vm1011 = vcmp.eq.s32.totalorder %v579, %v985
          %vm1012 = vcmp.eq.s32.totalorder %v579, %v986
          %vm1013 = vcmp.eq.s32.totalorder %v580, %v985
          %vm1014 = vcmp.eq.s32.totalorder %v580, %v986
          %vm1015 = vcmp.eq.s32.totalorder %v581, %v985
          %vm1016 = vcmp.eq.s32.totalorder %v581, %v986
          %vm1017 = vcmp.eq.s32.totalorder %v582, %v985
          %vm1018 = vcmp.eq.s32.totalorder %v582, %v986
          %s1019 = scalar_lea.vmem [#allocation4], 4
          %v1020 = vld [vmem:[%s1019] ss:$8 sm:$0x3]
          %v1022 = vperm.slane %v1020, 0
          %v1023 = vperm.slane %v1020, 1
          %v1026 = vsel %vm987, %v1022, 0.0
          %v1027 = vsel %vm988, %v1023, 0.0
          %v1028 = vsel %vm989, %v1022, 0.0
          %v1029 = vsel %vm990, %v1023, 0.0
          %v1030 = vsel %vm991, %v1022, 0.0
          %v1031 = vsel %vm992, %v1023, 0.0
          %v1032 = vsel %vm993, %v1022, 0.0
          %v1033 = vsel %vm994, %v1023, 0.0
          %v1034 = vsel %vm995, %v1022, 0.0
          %v1035 = vsel %vm996, %v1023, 0.0
          %v1036 = vsel %vm997, %v1022, 0.0
          %v1037 = vsel %vm998, %v1023, 0.0
          %v1038 = vsel %vm999, %v1022, 0.0
          %v1039 = vsel %vm1000, %v1023, 0.0
          %v1040 = vsel %vm1001, %v1022, 0.0
          %v1041 = vsel %vm1002, %v1023, 0.0
          %v1042 = vsel %vm1003, %v1022, 0.0
          %v1043 = vsel %vm1004, %v1023, 0.0
          %v1044 = vsel %vm1005, %v1022, 0.0
          %v1045 = vsel %vm1006, %v1023, 0.0
          %v1046 = vsel %vm1007, %v1022, 0.0
          %v1047 = vsel %vm1008, %v1023, 0.0
          %v1048 = vsel %vm1009, %v1022, 0.0
          %v1049 = vsel %vm1010, %v1023, 0.0
          %v1050 = vsel %vm1011, %v1022, 0.0
          %v1051 = vsel %vm1012, %v1023, 0.0
          %v1052 = vsel %vm1013, %v1022, 0.0
          %v1053 = vsel %vm1014, %v1023, 0.0
          %v1054 = vsel %vm1015, %v1022, 0.0
          %v1055 = vsel %vm1016, %v1023, 0.0
          %v1056 = vsel %vm1017, %v1022, 0.0
          %v1057 = vsel %vm1018, %v1023, 0.0
          %v1058 = vadd.f32 %v950, %v1026
          %v1059 = vadd.f32 %v951, %v1027
          %v1060 = vadd.f32 %v952, %v1028
          %v1061 = vadd.f32 %v953, %v1029
          %v1062 = vadd.f32 %v954, %v1030
          %v1063 = vadd.f32 %v955, %v1031
          %v1064 = vadd.f32 %v956, %v1032
          %v1065 = vadd.f32 %v957, %v1033
          %v1066 = vadd.f32 %v958, %v1034
          %v1067 = vadd.f32 %v959, %v1035
          %v1068 = vadd.f32 %v960, %v1036
          %v1069 = vadd.f32 %v961, %v1037
          %v1070 = vadd.f32 %v962, %v1038
          %v1071 = vadd.f32 %v963, %v1039
          %v1072 = vadd.f32 %v964, %v1040
          %v1073 = vadd.f32 %v965, %v1041
          %v1074 = vadd.f32 %v966, %v1042
          %v1075 = vadd.f32 %v967, %v1043
          %v1076 = vadd.f32 %v968, %v1044
          %v1077 = vadd.f32 %v969, %v1045
          %v1078 = vadd.f32 %v970, %v1046
          %v1079 = vadd.f32 %v971, %v1047
          %v1080 = vadd.f32 %v972, %v1048
          %v1081 = vadd.f32 %v973, %v1049
          %v1082 = vadd.f32 %v974, %v1050
          %v1083 = vadd.f32 %v975, %v1051
          %v1084 = vadd.f32 %v976, %v1052
          %v1085 = vadd.f32 %v977, %v1053
          %v1086 = vadd.f32 %v978, %v1054
          %v1087 = vadd.f32 %v979, %v1055
          %v1088 = vadd.f32 %v980, %v1056
          %v1089 = vadd.f32 %v981, %v1057
          %s1090 = scalar_lea.vmem [#allocation3], 5
          %v1091 = vld [vmem:[%s1090] ss:$8 sm:$0x3]
          %v1092 = vsub.s32 %v1091, %v584
          %v1093 = vperm.slane %v1092, 0
          %v1094 = vperm.slane %v1092, 1
          %vm1095 = vcmp.eq.s32.totalorder %v567, %v1093
          %vm1096 = vcmp.eq.s32.totalorder %v567, %v1094
          %vm1097 = vcmp.eq.s32.totalorder %v568, %v1093
          %vm1098 = vcmp.eq.s32.totalorder %v568, %v1094
          %vm1099 = vcmp.eq.s32.totalorder %v569, %v1093
          %vm1100 = vcmp.eq.s32.totalorder %v569, %v1094
          %vm1101 = vcmp.eq.s32.totalorder %v570, %v1093
          %vm1102 = vcmp.eq.s32.totalorder %v570, %v1094
          %vm1103 = vcmp.eq.s32.totalorder %v571, %v1093
          %vm1104 = vcmp.eq.s32.totalorder %v571, %v1094
          %vm1105 = vcmp.eq.s32.totalorder %v572, %v1093
          %vm1106 = vcmp.eq.s32.totalorder %v572, %v1094
          %vm1107 = vcmp.eq.s32.totalorder %v573, %v1093
          %vm1108 = vcmp.eq.s32.totalorder %v573, %v1094
          %vm1109 = vcmp.eq.s32.totalorder %v574, %v1093
          %vm1110 = vcmp.eq.s32.totalorder %v574, %v1094
          %vm1111 = vcmp.eq.s32.totalorder %v575, %v1093
          %vm1112 = vcmp.eq.s32.totalorder %v575, %v1094
          %vm1113 = vcmp.eq.s32.totalorder %v576, %v1093
          %vm1114 = vcmp.eq.s32.totalorder %v576, %v1094
          %vm1115 = vcmp.eq.s32.totalorder %v577, %v1093
          %vm1116 = vcmp.eq.s32.totalorder %v577, %v1094
          %vm1117 = vcmp.eq.s32.totalorder %v578, %v1093
          %vm1118 = vcmp.eq.s32.totalorder %v578, %v1094
          %vm1119 = vcmp.eq.s32.totalorder %v579, %v1093
          %vm1120 = vcmp.eq.s32.totalorder %v579, %v1094
          %vm1121 = vcmp.eq.s32.totalorder %v580, %v1093
          %vm1122 = vcmp.eq.s32.totalorder %v580, %v1094
          %vm1123 = vcmp.eq.s32.totalorder %v581, %v1093
          %vm1124 = vcmp.eq.s32.totalorder %v581, %v1094
          %vm1125 = vcmp.eq.s32.totalorder %v582, %v1093
          %vm1126 = vcmp.eq.s32.totalorder %v582, %v1094
          %s1127 = scalar_lea.vmem [#allocation4], 5
          %v1128 = vld [vmem:[%s1127] ss:$8 sm:$0x3]
          %v1130 = vperm.slane %v1128, 0
          %v1131 = vperm.slane %v1128, 1
          %v1134 = vsel %vm1095, %v1130, 0.0
          %v1135 = vsel %vm1096, %v1131, 0.0
          %v1136 = vsel %vm1097, %v1130, 0.0
          %v1137 = vsel %vm1098, %v1131, 0.0
          %v1138 = vsel %vm1099, %v1130, 0.0
          %v1139 = vsel %vm1100, %v1131, 0.0
          %v1140 = vsel %vm1101, %v1130, 0.0
          %v1141 = vsel %vm1102, %v1131, 0.0
          %v1142 = vsel %vm1103, %v1130, 0.0
          %v1143 = vsel %vm1104, %v1131, 0.0
          %v1144 = vsel %vm1105, %v1130, 0.0
          %v1145 = vsel %vm1106, %v1131, 0.0
          %v1146 = vsel %vm1107, %v1130, 0.0
          %v1147 = vsel %vm1108, %v1131, 0.0
          %v1148 = vsel %vm1109, %v1130, 0.0
          %v1149 = vsel %vm1110, %v1131, 0.0
          %v1150 = vsel %vm1111, %v1130, 0.0
          %v1151 = vsel %vm1112, %v1131, 0.0
          %v1152 = vsel %vm1113, %v1130, 0.0
          %v1153 = vsel %vm1114, %v1131, 0.0
          %v1154 = vsel %vm1115, %v1130, 0.0
          %v1155 = vsel %vm1116, %v1131, 0.0
          %v1156 = vsel %vm1117, %v1130, 0.0
          %v1157 = vsel %vm1118, %v1131, 0.0
          %v1158 = vsel %vm1119, %v1130, 0.0
          %v1159 = vsel %vm1120, %v1131, 0.0
          %v1160 = vsel %vm1121, %v1130, 0.0
          %v1161 = vsel %vm1122, %v1131, 0.0
          %v1162 = vsel %vm1123, %v1130, 0.0
          %v1163 = vsel %vm1124, %v1131, 0.0
          %v1164 = vsel %vm1125, %v1130, 0.0
          %v1165 = vsel %vm1126, %v1131, 0.0
          %v1166 = vadd.f32 %v1058, %v1134
          %v1167 = vadd.f32 %v1059, %v1135
          %v1168 = vadd.f32 %v1060, %v1136
          %v1169 = vadd.f32 %v1061, %v1137
          %v1170 = vadd.f32 %v1062, %v1138
          %v1171 = vadd.f32 %v1063, %v1139
          %v1172 = vadd.f32 %v1064, %v1140
          %v1173 = vadd.f32 %v1065, %v1141
          %v1174 = vadd.f32 %v1066, %v1142
          %v1175 = vadd.f32 %v1067, %v1143
          %v1176 = vadd.f32 %v1068, %v1144
          %v1177 = vadd.f32 %v1069, %v1145
          %v1178 = vadd.f32 %v1070, %v1146
          %v1179 = vadd.f32 %v1071, %v1147
          %v1180 = vadd.f32 %v1072, %v1148
          %v1181 = vadd.f32 %v1073, %v1149
          %v1182 = vadd.f32 %v1074, %v1150
          %v1183 = vadd.f32 %v1075, %v1151
          %v1184 = vadd.f32 %v1076, %v1152
          %v1185 = vadd.f32 %v1077, %v1153
          %v1186 = vadd.f32 %v1078, %v1154
          %v1187 = vadd.f32 %v1079, %v1155
          %v1188 = vadd.f32 %v1080, %v1156
          %v1189 = vadd.f32 %v1081, %v1157
          %v1190 = vadd.f32 %v1082, %v1158
          %v1191 = vadd.f32 %v1083, %v1159
          %v1192 = vadd.f32 %v1084, %v1160
          %v1193 = vadd.f32 %v1085, %v1161
          %v1194 = vadd.f32 %v1086, %v1162
          %v1195 = vadd.f32 %v1087, %v1163
          %v1196 = vadd.f32 %v1088, %v1164
          %v1197 = vadd.f32 %v1089, %v1165
          %s1198 = scalar_lea.vmem [#allocation3], 6
          %v1199 = vld [vmem:[%s1198] ss:$8 sm:$0x3]
          %v1200 = vsub.s32 %v1199, %v584
          %v1201 = vperm.slane %v1200, 0
          %v1202 = vperm.slane %v1200, 1
          %vm1203 = vcmp.eq.s32.totalorder %v567, %v1201
          %vm1204 = vcmp.eq.s32.totalorder %v567, %v1202
          %vm1205 = vcmp.eq.s32.totalorder %v568, %v1201
          %vm1206 = vcmp.eq.s32.totalorder %v568, %v1202
          %vm1207 = vcmp.eq.s32.totalorder %v569, %v1201
          %vm1208 = vcmp.eq.s32.totalorder %v569, %v1202
          %vm1209 = vcmp.eq.s32.totalorder %v570, %v1201
          %vm1210 = vcmp.eq.s32.totalorder %v570, %v1202
          %vm1211 = vcmp.eq.s32.totalorder %v571, %v1201
          %vm1212 = vcmp.eq.s32.totalorder %v571, %v1202
          %vm1213 = vcmp.eq.s32.totalorder %v572, %v1201
          %vm1214 = vcmp.eq.s32.totalorder %v572, %v1202
          %vm1215 = vcmp.eq.s32.totalorder %v573, %v1201
          %vm1216 = vcmp.eq.s32.totalorder %v573, %v1202
          %vm1217 = vcmp.eq.s32.totalorder %v574, %v1201
          %vm1218 = vcmp.eq.s32.totalorder %v574, %v1202
          %vm1219 = vcmp.eq.s32.totalorder %v575, %v1201
          %vm1220 = vcmp.eq.s32.totalorder %v575, %v1202
          %vm1221 = vcmp.eq.s32.totalorder %v576, %v1201
          %vm1222 = vcmp.eq.s32.totalorder %v576, %v1202
          %vm1223 = vcmp.eq.s32.totalorder %v577, %v1201
          %vm1224 = vcmp.eq.s32.totalorder %v577, %v1202
          %vm1225 = vcmp.eq.s32.totalorder %v578, %v1201
          %vm1226 = vcmp.eq.s32.totalorder %v578, %v1202
          %vm1227 = vcmp.eq.s32.totalorder %v579, %v1201
          %vm1228 = vcmp.eq.s32.totalorder %v579, %v1202
          %vm1229 = vcmp.eq.s32.totalorder %v580, %v1201
          %vm1230 = vcmp.eq.s32.totalorder %v580, %v1202
          %vm1231 = vcmp.eq.s32.totalorder %v581, %v1201
          %vm1232 = vcmp.eq.s32.totalorder %v581, %v1202
          %vm1233 = vcmp.eq.s32.totalorder %v582, %v1201
          %vm1234 = vcmp.eq.s32.totalorder %v582, %v1202
          %s1235 = scalar_lea.vmem [#allocation4], 6
          %v1236 = vld [vmem:[%s1235] ss:$8 sm:$0x3]
          %v1238 = vperm.slane %v1236, 0
          %v1239 = vperm.slane %v1236, 1
          %v1242 = vsel %vm1203, %v1238, 0.0
          %v1243 = vsel %vm1204, %v1239, 0.0
          %v1244 = vsel %vm1205, %v1238, 0.0
          %v1245 = vsel %vm1206, %v1239, 0.0
          %v1246 = vsel %vm1207, %v1238, 0.0
          %v1247 = vsel %vm1208, %v1239, 0.0
          %v1248 = vsel %vm1209, %v1238, 0.0
          %v1249 = vsel %vm1210, %v1239, 0.0
          %v1250 = vsel %vm1211, %v1238, 0.0
          %v1251 = vsel %vm1212, %v1239, 0.0
          %v1252 = vsel %vm1213, %v1238, 0.0
          %v1253 = vsel %vm1214, %v1239, 0.0
          %v1254 = vsel %vm1215, %v1238, 0.0
          %v1255 = vsel %vm1216, %v1239, 0.0
          %v1256 = vsel %vm1217, %v1238, 0.0
          %v1257 = vsel %vm1218, %v1239, 0.0
          %v1258 = vsel %vm1219, %v1238, 0.0
          %v1259 = vsel %vm1220, %v1239, 0.0
          %v1260 = vsel %vm1221, %v1238, 0.0
          %v1261 = vsel %vm1222, %v1239, 0.0
          %v1262 = vsel %vm1223, %v1238, 0.0
          %v1263 = vsel %vm1224, %v1239, 0.0
          %v1264 = vsel %vm1225, %v1238, 0.0
          %v1265 = vsel %vm1226, %v1239, 0.0
          %v1266 = vsel %vm1227, %v1238, 0.0
          %v1267 = vsel %vm1228, %v1239, 0.0
          %v1268 = vsel %vm1229, %v1238, 0.0
          %v1269 = vsel %vm1230, %v1239, 0.0
          %v1270 = vsel %vm1231, %v1238, 0.0
          %v1271 = vsel %vm1232, %v1239, 0.0
          %v1272 = vsel %vm1233, %v1238, 0.0
          %v1273 = vsel %vm1234, %v1239, 0.0
          %v1274 = vadd.f32 %v1166, %v1242
          %v1275 = vadd.f32 %v1167, %v1243
          %v1276 = vadd.f32 %v1168, %v1244
          %v1277 = vadd.f32 %v1169, %v1245
          %v1278 = vadd.f32 %v1170, %v1246
          %v1279 = vadd.f32 %v1171, %v1247
          %v1280 = vadd.f32 %v1172, %v1248
          %v1281 = vadd.f32 %v1173, %v1249
          %v1282 = vadd.f32 %v1174, %v1250
          %v1283 = vadd.f32 %v1175, %v1251
          %v1284 = vadd.f32 %v1176, %v1252
          %v1285 = vadd.f32 %v1177, %v1253
          %v1286 = vadd.f32 %v1178, %v1254
          %v1287 = vadd.f32 %v1179, %v1255
          %v1288 = vadd.f32 %v1180, %v1256
          %v1289 = vadd.f32 %v1181, %v1257
          %v1290 = vadd.f32 %v1182, %v1258
          %v1291 = vadd.f32 %v1183, %v1259
          %v1292 = vadd.f32 %v1184, %v1260
          %v1293 = vadd.f32 %v1185, %v1261
          %v1294 = vadd.f32 %v1186, %v1262
          %v1295 = vadd.f32 %v1187, %v1263
          %v1296 = vadd.f32 %v1188, %v1264
          %v1297 = vadd.f32 %v1189, %v1265
          %v1298 = vadd.f32 %v1190, %v1266
          %v1299 = vadd.f32 %v1191, %v1267
          %v1300 = vadd.f32 %v1192, %v1268
          %v1301 = vadd.f32 %v1193, %v1269
          %v1302 = vadd.f32 %v1194, %v1270
          %v1303 = vadd.f32 %v1195, %v1271
          %v1304 = vadd.f32 %v1196, %v1272
          %v1305 = vadd.f32 %v1197, %v1273
          %s1306 = scalar_lea.vmem [#allocation3], 7
          %v1307 = vld [vmem:[%s1306] ss:$8 sm:$0x3]
          %v1308 = vsub.s32 %v1307, %v584
          %v1309 = vperm.slane %v1308, 0
          %v1310 = vperm.slane %v1308, 1
          %vm1311 = vcmp.eq.s32.totalorder %v567, %v1309
          %vm1312 = vcmp.eq.s32.totalorder %v567, %v1310
          %vm1313 = vcmp.eq.s32.totalorder %v568, %v1309
          %vm1314 = vcmp.eq.s32.totalorder %v568, %v1310
          %vm1315 = vcmp.eq.s32.totalorder %v569, %v1309
          %vm1316 = vcmp.eq.s32.totalorder %v569, %v1310
          %vm1317 = vcmp.eq.s32.totalorder %v570, %v1309
          %vm1318 = vcmp.eq.s32.totalorder %v570, %v1310
          %vm1319 = vcmp.eq.s32.totalorder %v571, %v1309
          %vm1320 = vcmp.eq.s32.totalorder %v571, %v1310
          %vm1321 = vcmp.eq.s32.totalorder %v572, %v1309
          %vm1322 = vcmp.eq.s32.totalorder %v572, %v1310
          %vm1323 = vcmp.eq.s32.totalorder %v573, %v1309
          %vm1324 = vcmp.eq.s32.totalorder %v573, %v1310
          %vm1325 = vcmp.eq.s32.totalorder %v574, %v1309
          %vm1326 = vcmp.eq.s32.totalorder %v574, %v1310
          %vm1327 = vcmp.eq.s32.totalorder %v575, %v1309
          %vm1328 = vcmp.eq.s32.totalorder %v575, %v1310
          %vm1329 = vcmp.eq.s32.totalorder %v576, %v1309
          %vm1330 = vcmp.eq.s32.totalorder %v576, %v1310
          %vm1331 = vcmp.eq.s32.totalorder %v577, %v1309
          %vm1332 = vcmp.eq.s32.totalorder %v577, %v1310
          %vm1333 = vcmp.eq.s32.totalorder %v578, %v1309
          %vm1334 = vcmp.eq.s32.totalorder %v578, %v1310
          %vm1335 = vcmp.eq.s32.totalorder %v579, %v1309
          %vm1336 = vcmp.eq.s32.totalorder %v579, %v1310
          %vm1337 = vcmp.eq.s32.totalorder %v580, %v1309
          %vm1338 = vcmp.eq.s32.totalorder %v580, %v1310
          %vm1339 = vcmp.eq.s32.totalorder %v581, %v1309
          %vm1340 = vcmp.eq.s32.totalorder %v581, %v1310
          %vm1341 = vcmp.eq.s32.totalorder %v582, %v1309
          %vm1342 = vcmp.eq.s32.totalorder %v582, %v1310
          %s1343 = scalar_lea.vmem [#allocation4], 7
          %v1344 = vld [vmem:[%s1343] ss:$8 sm:$0x3]
          %v1346 = vperm.slane %v1344, 0
          %v1347 = vperm.slane %v1344, 1
          %v1350 = vsel %vm1311, %v1346, 0.0
          %v1351 = vsel %vm1312, %v1347, 0.0
          %v1352 = vsel %vm1313, %v1346, 0.0
          %v1353 = vsel %vm1314, %v1347, 0.0
          %v1354 = vsel %vm1315, %v1346, 0.0
          %v1355 = vsel %vm1316, %v1347, 0.0
          %v1356 = vsel %vm1317, %v1346, 0.0
          %v1357 = vsel %vm1318, %v1347, 0.0
          %v1358 = vsel %vm1319, %v1346, 0.0
          %v1359 = vsel %vm1320, %v1347, 0.0
          %v1360 = vsel %vm1321, %v1346, 0.0
          %v1361 = vsel %vm1322, %v1347, 0.0
          %v1362 = vsel %vm1323, %v1346, 0.0
          %v1363 = vsel %vm1324, %v1347, 0.0
          %v1364 = vsel %vm1325, %v1346, 0.0
          %v1365 = vsel %vm1326, %v1347, 0.0
          %v1366 = vsel %vm1327, %v1346, 0.0
          %v1367 = vsel %vm1328, %v1347, 0.0
          %v1368 = vsel %vm1329, %v1346, 0.0
          %v1369 = vsel %vm1330, %v1347, 0.0
          %v1370 = vsel %vm1331, %v1346, 0.0
          %v1371 = vsel %vm1332, %v1347, 0.0
          %v1372 = vsel %vm1333, %v1346, 0.0
          %v1373 = vsel %vm1334, %v1347, 0.0
          %v1374 = vsel %vm1335, %v1346, 0.0
          %v1375 = vsel %vm1336, %v1347, 0.0
          %v1376 = vsel %vm1337, %v1346, 0.0
          %v1377 = vsel %vm1338, %v1347, 0.0
          %v1378 = vsel %vm1339, %v1346, 0.0
          %v1379 = vsel %vm1340, %v1347, 0.0
          %v1380 = vsel %vm1341, %v1346, 0.0
          %v1381 = vsel %vm1342, %v1347, 0.0
          %v1382 = vadd.f32 %v1274, %v1350
          %v1383 = vadd.f32 %v1275, %v1351
          %v1384 = vadd.f32 %v1276, %v1352
          %v1385 = vadd.f32 %v1277, %v1353
          %v1386 = vadd.f32 %v1278, %v1354
          %v1387 = vadd.f32 %v1279, %v1355
          %v1388 = vadd.f32 %v1280, %v1356
          %v1389 = vadd.f32 %v1281, %v1357
          %v1390 = vadd.f32 %v1282, %v1358
          %v1391 = vadd.f32 %v1283, %v1359
          %v1392 = vadd.f32 %v1284, %v1360
          %v1393 = vadd.f32 %v1285, %v1361
          %v1394 = vadd.f32 %v1286, %v1362
          %v1395 = vadd.f32 %v1287, %v1363
          %v1396 = vadd.f32 %v1288, %v1364
          %v1397 = vadd.f32 %v1289, %v1365
          %v1398 = vadd.f32 %v1290, %v1366
          %v1399 = vadd.f32 %v1291, %v1367
          %v1400 = vadd.f32 %v1292, %v1368
          %v1401 = vadd.f32 %v1293, %v1369
          %v1402 = vadd.f32 %v1294, %v1370
          %v1403 = vadd.f32 %v1295, %v1371
          %v1404 = vadd.f32 %v1296, %v1372
          %v1405 = vadd.f32 %v1297, %v1373
          %v1406 = vadd.f32 %v1298, %v1374
          %v1407 = vadd.f32 %v1299, %v1375
          %v1408 = vadd.f32 %v1300, %v1376
          %v1409 = vadd.f32 %v1301, %v1377
          %v1410 = vadd.f32 %v1302, %v1378
          %v1411 = vadd.f32 %v1303, %v1379
          %v1412 = vadd.f32 %v1304, %v1380
          %v1413 = vadd.f32 %v1305, %v1381
          %v1414 = vld [vmem:[%s339] sm:$0xf]
          %v1415 = vld [vmem:[#allocation2] sm:$0xff]
          %1416 = vmatpush.msra.mxu0 %v1412
          %1417 = vmatpush.msra.mxu0 %v1410
          %1418 = vmatpush.msra.mxu0 %v1408
          %1419 = vmatpush.msra.mxu0 %v1406
          %1420 = vmatpush.msra.mxu0 %v1404
          %1421 = vmatpush.msra.mxu0 %v1402
          %1422 = vmatpush.msra.mxu0 %v1400
          %1423 = vmatpush.msra.mxu0 %v1398
          %1424 = vmatpush.msra.mxu0 %v1396
          %1425 = vmatpush.msra.mxu0 %v1394
          %1426 = vmatpush.msra.mxu0 %v1392
          %1427 = vmatpush.msra.mxu0 %v1390
          %1428 = vmatpush.msra.mxu0 %v1388
          %1429 = vmatpush.msra.mxu0 %v1386
          %1430 = vmatpush.msra.mxu0 %v1384
          %1431 = vmatpush.msra.mxu0 %v1382
          %1432 = vmatmul.f32.gmra.mxu0 %v1414
          %v1433 = vpop.f32.mrf.mxu0
          %v1434 = vadd.f32 0.0, %v1433
          %1435 = vdwg.mxu0
          %1436 = vmatpush.msra.mxu0 %v1413
          %1437 = vmatpush.msra.mxu0 %v1411
          %1438 = vmatpush.msra.mxu0 %v1409
          %1439 = vmatpush.msra.mxu0 %v1407
          %1440 = vmatpush.msra.mxu0 %v1405
          %1441 = vmatpush.msra.mxu0 %v1403
          %1442 = vmatpush.msra.mxu0 %v1401
          %1443 = vmatpush.msra.mxu0 %v1399
          %1444 = vmatpush.msra.mxu0 %v1397
          %1445 = vmatpush.msra.mxu0 %v1395
          %1446 = vmatpush.msra.mxu0 %v1393
          %1447 = vmatpush.msra.mxu0 %v1391
          %1448 = vmatpush.msra.mxu0 %v1389
          %1449 = vmatpush.msra.mxu0 %v1387
          %1450 = vmatpush.msra.mxu0 %v1385
          %1451 = vmatpush.msra.mxu0 %v1383
          %1452 = vmatmul.f32.gmra.mxu0 %v1414
          %v1453 = vpop.f32.mrf.mxu0
          %v1454 = vadd.f32 0.0, %v1453
          %1455 = vdwg.mxu0
          %v1458 = vrot.slane %v1454, 4
          %vm1459 = vcmask 1043456
          %v1460 = vsel %vm1459, %v1434, %v1458
          %v1462 = vadd.f32 %v1415, %v1460
          %1463 = vst [vmem:[#allocation2] sm:$0xff] %v1462
        $region40: #{tpu_custom_call.1} parent=31 // pred_fallthru
          _
        %p1464 = scmp.eq.s32.totalorder %s39, 6
        // Predicated region
        $region41: #{tpu_custom_call.1} parent=31 // pred_check
          %p1465 = pneg %p1464
        $region42: #{tpu_custom_call.1} parent=31 // pred_check_branch
          %1467 = sbr.rel (%p1465) target = $region44
        $region43: #{tpu_custom_call.1} parent=31 // pred_region
          %v1468 = vld [vmem:[#allocation2] sm:$0xff]
          %1469 = vst [vmem:[%s319] sm:$0xff] %v1468
        $region44: #{tpu_custom_call.1} parent=31 // pred_fallthru
          _
        %s1470 = sand.u32 %s169, 1
        %s1471 = scalar_lea.sflag [#allocation9], %s1470
        %s1472 = sand.u32 %s169, 1
        %s1473 = smul.addr %s1472, 8
        %s1474 = scalar_lea.vmem [#allocation8], %s1473
        // Predicated region
        $region45: #{tpu_custom_call.1} parent=31 // pred_check
          %p1475 = pneg %p179
        $region46: #{tpu_custom_call.1} parent=31 // pred_check_branch
          %1477 = sbr.rel (%p1475) target = $region48
        $region47: #{tpu_custom_call.1} parent=31 // pred_region
          %s1478 = smul.u32 2, %s38
          %1480 = vsyncadd %s1471, 0
          %s1481 = smul.addr %s37, 8
          %s1482 = sadd.s32 %s1478, %s1481
          %s1483 = smul.addr %s1482, 4
          %s1484 = scalar_lea.hbm %s5, %s1483
          %s1486 = sshll.u32 %s1474, 4
          %s1487 = int_to_ptr.vmem [resolvable:$true] %s1486
          %s1488 = sshll.u32 %s1484, 4
          %s1489 = int_to_ptr.hbm [resolvable:$true] %s1488
          %1491 = dma.vmem_to_hbm [thread:$0]  %s1487, 128, %s1489, %s1471
        $region48: #{tpu_custom_call.1} parent=31 // pred_fallthru
          _
      $region32: #{tpu_custom_call.1} parent=5 // pred_fallthru
        _
      %p1492 = scmp.le.s32.totalorder 2, %s27
      // Predicated region
      $region49: #{tpu_custom_call.1} parent=5 // pred_check
        %p1493 = pneg %p1492
      $region50: #{tpu_custom_call.1} parent=5 // pred_check_branch
        %1495 = sbr.rel (%p1493) target = $region52
      $region51: #{tpu_custom_call.1} parent=5 // pred_region
        %s1496 = ssub.s32 %s27, 2
        // Predicated region
        $region53: #{tpu_custom_call.1} parent=51 // pred_check
          %p1497 = pneg %p185
        $region54: #{tpu_custom_call.1} parent=51 // pred_check_branch
          %1499 = sbr.rel (%p1497) target = $region56
        $region55: #{tpu_custom_call.1} parent=51 // pred_region
          %s1500 = sand.u32 %s170, 1
          %s1501 = scalar_lea.sflag [#allocation9], %s1500
          %s1502 = sand.u32 %s170, 1
          %s1503 = smul.addr %s1502, 8
          %s1504 = scalar_lea.vmem [#allocation8], %s1503
          %1506 = dma.done %s1501, 128
        $region56: #{tpu_custom_call.1} parent=51 // pred_fallthru
          _
      $region52: #{tpu_custom_call.1} parent=5 // pred_fallthru
        _
    $region6: #{tpu_custom_call.1} parent=1 // loop_footer
      %s31 = sadd.s32 1, %s27
    $region7: #{tpu_custom_call.1} parent=1 // loop_footer_branch
      %26 = sbr.rel target = $region3
    $region8: #{tpu_custom_call.1} parent=1 // loop_exit
      _
    %1507 = vsyncpa [#allocation9], 1
    %s1508 = scalar_lea.sflag [#allocation9], 1
    %1509 = vsyncpa %s1508, 1

</llo_original>
